<compile_context>
chip_gen: v5e
topology: v5e:2x2
jax: 0.10.0
libtpu: 0.0.40
codegen_flags: <defaults>
</compile_context>

<pallas_src>
import functools

import jax
import jax.numpy as jnp
from jax.experimental import pallas as pl
from jax.experimental.pallas import tpu as pltpu


def _round_up(x, m):
    return ((x + m - 1) // m) * m


# ----------------------------- Pallas kernel -------------------------------

def _conv_tap_kernel(x_ref, w_ref, b_ref, o_ref, acc_ref, *, KH, KW, stride,
                     dilation, tile_Ho, Wo):
    """One (spatial-tile, C_out-tile) step of the strided conv.

    x_ref  : (s, s, tile_Hq, Wq, Cp)  phase-split bf16 activations (with halo)
    w_ref  : (KH*KW, Cp, tn)          per-tap weight matrices (bf16)
    b_ref  : (1, tn)                  bias row (f32)
    o_ref  : (tile_Ho*Wo, tn)         output tile (bf16), lane-dense
    acc_ref: (tile_Ho*Wo, tn)         f32 accumulator scratch
    """
    Cp = x_ref.shape[-1]
    # Fold the bias into accumulator init (no separate full-tile add at the end).
    acc_ref[...] = jnp.broadcast_to(b_ref[...], acc_ref.shape)
    # Conv as KH*KW accumulating MXU matmuls over shifted windows of the
    # VMEM-resident tile: padded row ho*s + kh*d == (ho + dh)*s + ph.
    # TODO(synk): dw!=0 taps start at a non-8-aligned sublane offset (XLU
    # shift); pre-shifting those phases in the wrapper would trade HBM traffic
    # for XLU time - left as-is since it is normally hidden under MXU time.
    for kh in range(KH):
        dh, ph = divmod(kh * dilation, stride)
        for kw in range(KW):
            dw, pw = divmod(kw * dilation, stride)
            slab = x_ref[ph, pw, dh:dh + tile_Ho, dw:dw + Wo, :]   # (tile_Ho, Wo, Cp)
            acc_ref[...] += jnp.dot(slab.reshape(tile_Ho * Wo, Cp),
                                    w_ref[kh * KW + kw],
                                    preferred_element_type=jnp.float32)
    o_ref[...] = acc_ref[...].astype(o_ref.dtype)


def _pallas_conv(x_t, w_taps, bias_row, *, KH, KW, stride, dilation,
                 tile_Ho, Wo, tn):
    """x_t: (NT, s, s, tile_Hq, Wq, Cp) bf16 halo'd spatial tiles;
    w_taps: (KH*KW, Cp, Np) bf16; bias_row: (1, Np) f32.
    Returns (NT, tile_Ho*Wo, Np) bf16."""
    NT, s, _, tile_Hq, Wq, Cp = x_t.shape
    Np = w_taps.shape[-1]
    assert Np % tn == 0
    grid = (NT, Np // tn)

    kern = functools.partial(_conv_tap_kernel, KH=KH, KW=KW, stride=stride,
                             dilation=dilation, tile_Ho=tile_Ho, Wo=Wo)

    # VMEM budget: double-buffered input/weight/output/bias blocks + f32 acc.
    x_blk = s * s * tile_Hq * Wq * Cp * 2
    w_blk = KH * KW * Cp * tn * 2
    o_blk = tile_Ho * Wo * tn * 2
    b_blk = 8 * tn * 4
    acc_b = tile_Ho * Wo * tn * 4
    need = 2 * (x_blk + w_blk + o_blk + b_blk) + acc_b
    try:
        info = pltpu.get_tpu_info()
        vmem_cap = int(getattr(info, "vmem_capacity_bytes", 64 * 1024 * 1024))
    except Exception:  # pragma: no cover - conservative fallback
        vmem_cap = 64 * 1024 * 1024
    # Leave headroom for Mosaic internal scratch (cap at ~80% of physical VMEM).
    vmem_limit = int(min(max(2 * need, 32 * 1024 * 1024), (vmem_cap * 4) // 5))

    cost = pl.CostEstimate(
        flops=int(2 * NT * tile_Ho * Wo * KH * KW * Cp * Np),
        transcendentals=0,
        bytes_accessed=int(x_t.size * 2 + NT * w_taps.size * 2
                           + NT * tile_Ho * Wo * Np * 2),
    )

    return pl.pallas_call(
        kern,
        out_shape=jax.ShapeDtypeStruct((NT, tile_Ho * Wo, Np), jnp.bfloat16),
        grid=grid,
        in_specs=[
            pl.BlockSpec((None, s, s, tile_Hq, Wq, Cp),
                         lambda t, j: (t, 0, 0, 0, 0, 0)),
            pl.BlockSpec((KH * KW, Cp, tn), lambda t, j: (0, 0, j)),
            pl.BlockSpec((1, tn), lambda t, j: (0, j)),
        ],
        out_specs=pl.BlockSpec((None, tile_Ho * Wo, tn),
                               lambda t, j: (t, 0, j)),
        scratch_shapes=[pltpu.VMEM((tile_Ho * Wo, tn), jnp.float32)],
        compiler_params=pltpu.CompilerParams(
            dimension_semantics=("parallel", "parallel"),
            vmem_limit_bytes=vmem_limit),
        cost_estimate=cost,
    )(x_t, w_taps, bias_row)


# --------------------------- Downsample2D module ---------------------------

class TtDownsample2D:
    """JAX/Pallas port of TtDownsample2D: strided 3x3 conv + bias."""

    def __init__(self, weight, bias, stride, padding, dilation, groups):
        assert groups == 1, "only groups=1 supported"  # TODO(synk): grouped conv
        C_out, C_in, KH, KW = weight.shape
        self.stride = int(stride)
        self.padding = int(padding)
        self.dilation = int(dilation)
        self.groups = groups
        self.C_out, self.C_in, self.KH, self.KW = C_out, C_in, KH, KW

        # Channel padding to lane-dense multiples of 128, done once.
        self.Cp = _round_up(C_in, 128)
        Np = _round_up(C_out, 128)
        # Full MXU N-width on v6e/v7x: tn=256 when possible, else one tn=Np tile
        # (e.g. Np=384); only pad further for very large, misaligned C_out.
        if Np % 256 == 0:
            self.tn = 256
        elif Np <= 512:
            self.tn = Np
        else:
            Np = _round_up(C_out, 256)
            self.tn = 256
        self.Np = Np

        # (C_out, C_in, KH, KW) -> (KH*KW, Cp, Np) bf16; bias -> (1, Np) f32.
        w = jnp.transpose(jnp.asarray(weight), (2, 3, 1, 0))       # (KH,KW,Cin,Cout)
        w = jnp.pad(w, ((0, 0), (0, 0),
                        (0, self.Cp - C_in), (0, self.Np - C_out)))
        self.w_taps = w.reshape(KH * KW, self.Cp, self.Np).astype(jnp.bfloat16)
        self.bias_row = jnp.pad(jnp.asarray(bias), (0, self.Np - C_out)
                                ).reshape(1, self.Np).astype(jnp.float32)

    def __call__(self, hidden_states, input_shape):
        """hidden_states: channels-last activation, (1, 1, B*H*W, C) like
        ttnn.conv2d (a (B, H, W, C) tensor also works).  Returns
        (out (1, 1, B*Ho*Wo, C_out) bf16, [C_out, Ho, Wo])."""
        B, C, H, W = input_shape
        assert C == self.C_in
        s, p, d = self.stride, self.padding, self.dilation
        KH, KW = self.KH, self.KW

        Ho = (H + 2 * p - d * (KH - 1) - 1) // s + 1
        Wo = (W + 2 * p - d * (KW - 1) - 1) // s + 1

        # Phase-split (space-to-depth over the stride) geometry + halo tiling.
        dh_max = ((KH - 1) * d) // s
        dw_max = ((KW - 1) * d) // s
        tile_Ho = min(Ho, 8)                       # ~8 output rows per grid step
        n_ht = -(-Ho // tile_Ho)
        Ho_pad = n_ht * tile_Ho
        tile_Hq = tile_Ho + dh_max
        Hq_pad = Ho_pad + dh_max
        Wq = Wo + dw_max
        H_need, W_need = Hq_pad * s, Wq * s

        # Channels-last in -> conv zero pad (+ alignment), channel pad, bf16.
        # TODO(synk): fuse pad + phase transpose + halo stack into one pass.
        x = jnp.asarray(hidden_states).reshape(B, H, W, C).astype(jnp.bfloat16)
        extra_h = max(0, H_need - (H + 2 * p))
        extra_w = max(0, W_need - (W + 2 * p))
        x = jnp.pad(x, ((0, 0), (p, p + extra_h), (p, p + extra_w),
                        (0, self.Cp - C)))
        x = x[:, :H_need, :W_need, :]

        # (B, H_need, W_need, Cp) -> (B, Hq_pad, s, Wq, s, Cp)
        x = x.reshape(B, Hq_pad, s, Wq, s, self.Cp)
        # Overlapping (halo) tiles along Hq -> (B, n_ht, tile_Hq, s, Wq, s, Cp)
        x = jnp.stack([x[:, t * tile_Ho:t * tile_Ho + tile_Hq]
                       for t in range(n_ht)], axis=1)
        # -> (B*n_ht, s, s, tile_Hq, Wq, Cp)
        x_t = x.transpose(0, 1, 3, 5, 2, 4, 6).reshape(
            B * n_ht, s, s, tile_Hq, Wq, self.Cp)

        out = _pallas_conv(x_t, self.w_taps, self.bias_row, KH=KH, KW=KW,
                           stride=s, dilation=d, tile_Ho=tile_Ho, Wo=Wo,
                           tn=self.tn)             # (B*n_ht, tile_Ho*Wo, Np)

        # Drop row/channel padding; keep ttnn.conv2d's flattened NHWC layout.
        out = out.reshape(B, Ho_pad, Wo, self.Np)[:, :Ho, :, :self.C_out]
        out = out.reshape(1, 1, B * Ho * Wo, self.C_out)
        return out, [self.C_out, Ho, Wo]


# --------------------------------- main -------------------------------------

if __name__ == "__main__":
    # Small shapes consistent with Downsample2D: 3x3 conv, stride 2, pad 1.
    B, C_in, H, W = 2, 4, 16, 16
    C_out, KH, KW = 8, 3, 3
    stride, padding, dilation, groups = 2, 1, 1, 1

    key = jax.random.PRNGKey(0)
    kx, kw, kb = jax.random.split(key, 3)
    x = jax.random.normal(kx, (B, C_in, H, W), dtype=jnp.float32)
    weight = jax.random.normal(kw, (C_out, C_in, KH, KW), dtype=jnp.float32) * 0.1
    bias = jax.random.normal(kb, (C_out,), dtype=jnp.float32) * 0.1

    mod = TtDownsample2D(weight, bias, stride, padding, dilation, groups)

    # ttnn.conv2d-style channels-last flattened activation layout.
    x_flat = jnp.transpose(x, (0, 2, 3, 1)).reshape(1, 1, B * H * W, C_in)

    out_flat, (C_o, H_o, W_o) = mod(x_flat, (B, C_in, H, W))
    out_flat = jax.block_until_ready(out_flat)

    assert (C_o, H_o, W_o) == (C_out, H // 2, W // 2), (C_o, H_o, W_o)
    assert out_flat.shape == (1, 1, B * H_o * W_o, C_out), out_flat.shape

    # NCHW view of the kernel output (verification only).
    out = out_flat.reshape(B, H_o, W_o, C_out).transpose(0, 3, 1, 2)
    out = out.astype(jnp.float32)

    # Reference: lax conv with the same bf16-rounded operands + f32 bias.
    xq = x.astype(jnp.bfloat16).astype(jnp.float32)
    wq = weight.astype(jnp.bfloat16).astype(jnp.float32)
    ref = jax.lax.conv_general_dilated(
        xq, wq,
        window_strides=(stride, stride),
        padding=((padding, padding), (padding, padding)),
        rhs_dilation=(dilation, dilation),
        dimension_numbers=("NCHW", "OIHW", "NCHW"),
        feature_group_count=groups,
    ) + bias.reshape(1, C_out, 1, 1)
    ref = jax.block_until_ready(ref)

    # Kernel output is bf16 (one extra rounding vs the f32 reference).
    err = float(jnp.max(jnp.abs(out - ref)))
    assert err < 3e-2, f"max abs error {err}"
    print("KERNEL_OK")
</pallas_src>

<mosaic_0001>
module attributes {stable_mosaic.version = 11 : i64} {
  func.func @_conv_tap_kernel(%arg0: i32, %arg1: i32, %arg2: memref<1x2x2x9x9x128xbf16, #tpu.memory_space<vmem>>, %arg3: memref<9x128x128xbf16, #tpu.memory_space<vmem>>, %arg4: memref<1x128xf32, #tpu.memory_space<vmem>>, %arg5: memref<1x64x128xbf16, #tpu.memory_space<vmem>>, %arg6: memref<64x128xf32, #tpu.memory_space<vmem>>) attributes {dimension_semantics = [#tpu.dimension_semantics<parallel>, #tpu.dimension_semantics<parallel>], iteration_bounds = array<i64: 2, 1>, scalar_prefetch = 0 : i64, scratch_operands = 1 : i64, tpu.core_type = #tpu.core_type<tc>, window_params = [{transform_indices = @transform_0, window_bounds = array<i64: 1, 2, 2, 9, 9, 128>}, {transform_indices = @transform_1, window_bounds = array<i64: 9, 128, 128>}, {transform_indices = @transform_2, window_bounds = array<i64: 1, 128>}, {transform_indices = @transform_3, window_bounds = array<i64: 1, 64, 128>}]} {
    %c0 = arith.constant 0 : index
    %c0_0 = arith.constant 0 : index
    %0 = vector.load %arg4[%c0, %c0_0] : memref<1x128xf32, #tpu.memory_space<vmem>>, vector<1x128xf32>
    %1 = vector.shape_cast %0 : vector<1x128xf32> to vector<1x128xf32>
    %2 = vector.broadcast %1 : vector<1x128xf32> to vector<64x128xf32>
    %c0_1 = arith.constant 0 : index
    %c0_2 = arith.constant 0 : index
    %3 = vector.load %arg6[%c0_1, %c0_2] : memref<64x128xf32, #tpu.memory_space<vmem>>, vector<64x128xf32>
    tpu.vector_store %arg6[%c0_1, %c0_2], %2 {strides = array<i32>} : memref<64x128xf32, #tpu.memory_space<vmem>>, vector<64x128xf32>,
    %c0_3 = arith.constant 0 : index
    %c0_4 = arith.constant 0 : index
    %c0_5 = arith.constant 0 : index
    %c0_6 = arith.constant 0 : index
    %c0_7 = arith.constant 0 : index
    %c0_8 = arith.constant 0 : index
    %4 = vector.load %arg2[%c0_3, %c0_4, %c0_5, %c0_6, %c0_7, %c0_8] : memref<1x2x2x9x9x128xbf16, #tpu.memory_space<vmem>>, vector<1x1x1x8x8x128xbf16>
    %5 = vector.shape_cast %4 : vector<1x1x1x8x8x128xbf16> to vector<8x8x128xbf16>
    %c0_9 = arith.constant 0 : index
    %c0_10 = arith.constant 0 : index
    %6 = vector.load %arg6[%c0_9, %c0_10] : memref<64x128xf32, #tpu.memory_space<vmem>>, vector<64x128xf32>
    %7 = vector.shape_cast %5 : vector<8x8x128xbf16> to vector<64x128xbf16>
    %c0_11 = arith.constant 0 : index
    %c0_12 = arith.constant 0 : index
    %c0_13 = arith.constant 0 : index
    %8 = vector.load %arg3[%c0_11, %c0_12, %c0_13] : memref<9x128x128xbf16, #tpu.memory_space<vmem>>, vector<1x128x128xbf16>
    %9 = vector.shape_cast %8 : vector<1x128x128xbf16> to vector<128x128xbf16>
    %cst = arith.constant dense<0.000000e+00> : vector<64x128xf32>
    %10 = tpu.matmul %7, %9, %cst {dimension_numbers = #tpu.dot_dimension_numbers<[1], [0], [0], [1], [0, 0, 1, 1], [], []>} : vector<64x128xbf16>, vector<128x128xbf16>, vector<64x128xf32> -> vector<64x128xf32>
    %11 = arith.addf %6, %10 : vector<64x128xf32>
    %c0_14 = arith.constant 0 : index
    %c0_15 = arith.constant 0 : index
    %12 = vector.load %arg6[%c0_14, %c0_15] : memref<64x128xf32, #tpu.memory_space<vmem>>, vector<64x128xf32>
    tpu.vector_store %arg6[%c0_14, %c0_15], %11 {strides = array<i32>} : memref<64x128xf32, #tpu.memory_space<vmem>>, vector<64x128xf32>,
    %c0_16 = arith.constant 0 : index
    %c0_17 = arith.constant 0 : index
    %c1 = arith.constant 1 : index
    %c0_18 = arith.constant 0 : index
    %c0_19 = arith.constant 0 : index
    %c0_20 = arith.constant 0 : index
    %13 = vector.load %arg2[%c0_16, %c0_17, %c1, %c0_18, %c0_19, %c0_20] : memref<1x2x2x9x9x128xbf16, #tpu.memory_space<vmem>>, vector<1x1x1x8x8x128xbf16>
    %14 = vector.shape_cast %13 : vector<1x1x1x8x8x128xbf16> to vector<8x8x128xbf16>
    %c0_21 = arith.constant 0 : index
    %c0_22 = arith.constant 0 : index
    %15 = vector.load %arg6[%c0_21, %c0_22] : memref<64x128xf32, #tpu.memory_space<vmem>>, vector<64x128xf32>
    %16 = vector.shape_cast %14 : vector<8x8x128xbf16> to vector<64x128xbf16>
    %c1_23 = arith.constant 1 : index
    %c0_24 = arith.constant 0 : index
    %c0_25 = arith.constant 0 : index
    %17 = vector.load %arg3[%c1_23, %c0_24, %c0_25] : memref<9x128x128xbf16, #tpu.memory_space<vmem>>, vector<1x128x128xbf16>
    %18 = vector.shape_cast %17 : vector<1x128x128xbf16> to vector<128x128xbf16>
    %cst_26 = arith.constant dense<0.000000e+00> : vector<64x128xf32>
    %19 = tpu.matmul %16, %18, %cst_26 {dimension_numbers = #tpu.dot_dimension_numbers<[1], [0], [0], [1], [0, 0, 1, 1], [], []>} : vector<64x128xbf16>, vector<128x128xbf16>, vector<64x128xf32> -> vector<64x128xf32>
    %20 = arith.addf %15, %19 : vector<64x128xf32>
    %c0_27 = arith.constant 0 : index
    %c0_28 = arith.constant 0 : index
    %21 = vector.load %arg6[%c0_27, %c0_28] : memref<64x128xf32, #tpu.memory_space<vmem>>, vector<64x128xf32>
    tpu.vector_store %arg6[%c0_27, %c0_28], %20 {strides = array<i32>} : memref<64x128xf32, #tpu.memory_space<vmem>>, vector<64x128xf32>,
    %c0_29 = arith.constant 0 : index
    %c0_30 = arith.constant 0 : index
    %c0_31 = arith.constant 0 : index
    %c0_32 = arith.constant 0 : index
    %c1_33 = arith.constant 1 : index
    %c0_34 = arith.constant 0 : index
    %22 = vector.load %arg2[%c0_29, %c0_30, %c0_31, %c0_32, %c1_33, %c0_34] : memref<1x2x2x9x9x128xbf16, #tpu.memory_space<vmem>>, vector<1x1x1x8x8x128xbf16>
    %23 = vector.shape_cast %22 : vector<1x1x1x8x8x128xbf16> to vector<8x8x128xbf16>
    %c0_35 = arith.constant 0 : index
    %c0_36 = arith.constant 0 : index
    %24 = vector.load %arg6[%c0_35, %c0_36] : memref<64x128xf32, #tpu.memory_space<vmem>>, vector<64x128xf32>
    %25 = vector.shape_cast %23 : vector<8x8x128xbf16> to vector<64x128xbf16>
    %c2 = arith.constant 2 : index
    %c0_37 = arith.constant 0 : index
    %c0_38 = arith.constant 0 : index
    %26 = vector.load %arg3[%c2, %c0_37, %c0_38] : memref<9x128x128xbf16, #tpu.memory_space<vmem>>, vector<1x128x128xbf16>
    %27 = vector.shape_cast %26 : vector<1x128x128xbf16> to vector<128x128xbf16>
    %cst_39 = arith.constant dense<0.000000e+00> : vector<64x128xf32>
    %28 = tpu.matmul %25, %27, %cst_39 {dimension_numbers = #tpu.dot_dimension_numbers<[1], [0], [0], [1], [0, 0, 1, 1], [], []>} : vector<64x128xbf16>, vector<128x128xbf16>, vector<64x128xf32> -> vector<64x128xf32>
    %29 = arith.addf %24, %28 : vector<64x128xf32>
    %c0_40 = arith.constant 0 : index
    %c0_41 = arith.constant 0 : index
    %30 = vector.load %arg6[%c0_40, %c0_41] : memref<64x128xf32, #tpu.memory_space<vmem>>, vector<64x128xf32>
    tpu.vector_store %arg6[%c0_40, %c0_41], %29 {strides = array<i32>} : memref<64x128xf32, #tpu.memory_space<vmem>>, vector<64x128xf32>,
    %c0_42 = arith.constant 0 : index
    %c1_43 = arith.constant 1 : index
    %c0_44 = arith.constant 0 : index
    %c0_45 = arith.constant 0 : index
    %c0_46 = arith.constant 0 : index
    %c0_47 = arith.constant 0 : index
    %31 = vector.load %arg2[%c0_42, %c1_43, %c0_44, %c0_45, %c0_46, %c0_47] : memref<1x2x2x9x9x128xbf16, #tpu.memory_space<vmem>>, vector<1x1x1x8x8x128xbf16>
    %32 = vector.shape_cast %31 : vector<1x1x1x8x8x128xbf16> to vector<8x8x128xbf16>
    %c0_48 = arith.constant 0 : index
    %c0_49 = arith.constant 0 : index
    %33 = vector.load %arg6[%c0_48, %c0_49] : memref<64x128xf32, #tpu.memory_space<vmem>>, vector<64x128xf32>
    %34 = vector.shape_cast %32 : vector<8x8x128xbf16> to vector<64x128xbf16>
    %c3 = arith.constant 3 : index
    %c0_50 = arith.constant 0 : index
    %c0_51 = arith.constant 0 : index
    %35 = vector.load %arg3[%c3, %c0_50, %c0_51] : memref<9x128x128xbf16, #tpu.memory_space<vmem>>, vector<1x128x128xbf16>
    %36 = vector.shape_cast %35 : vector<1x128x128xbf16> to vector<128x128xbf16>
    %cst_52 = arith.constant dense<0.000000e+00> : vector<64x128xf32>
    %37 = tpu.matmul %34, %36, %cst_52 {dimension_numbers = #tpu.dot_dimension_numbers<[1], [0], [0], [1], [0, 0, 1, 1], [], []>} : vector<64x128xbf16>, vector<128x128xbf16>, vector<64x128xf32> -> vector<64x128xf32>
    %38 = arith.addf %33, %37 : vector<64x128xf32>
    %c0_53 = arith.constant 0 : index
    %c0_54 = arith.constant 0 : index
    %39 = vector.load %arg6[%c0_53, %c0_54] : memref<64x128xf32, #tpu.memory_space<vmem>>, vector<64x128xf32>
    tpu.vector_store %arg6[%c0_53, %c0_54], %38 {strides = array<i32>} : memref<64x128xf32, #tpu.memory_space<vmem>>, vector<64x128xf32>,
    %c0_55 = arith.constant 0 : index
    %c1_56 = arith.constant 1 : index
    %c1_57 = arith.constant 1 : index
    %c0_58 = arith.constant 0 : index
    %c0_59 = arith.constant 0 : index
    %c0_60 = arith.constant 0 : index
    %40 = vector.load %arg2[%c0_55, %c1_56, %c1_57, %c0_58, %c0_59, %c0_60] : memref<1x2x2x9x9x128xbf16, #tpu.memory_space<vmem>>, vector<1x1x1x8x8x128xbf16>
    %41 = vector.shape_cast %40 : vector<1x1x1x8x8x128xbf16> to vector<8x8x128xbf16>
    %c0_61 = arith.constant 0 : index
    %c0_62 = arith.constant 0 : index
    %42 = vector.load %arg6[%c0_61, %c0_62] : memref<64x128xf32, #tpu.memory_space<vmem>>, vector<64x128xf32>
    %43 = vector.shape_cast %41 : vector<8x8x128xbf16> to vector<64x128xbf16>
    %c4 = arith.constant 4 : index
    %c0_63 = arith.constant 0 : index
    %c0_64 = arith.constant 0 : index
    %44 = vector.load %arg3[%c4, %c0_63, %c0_64] : memref<9x128x128xbf16, #tpu.memory_space<vmem>>, vector<1x128x128xbf16>
    %45 = vector.shape_cast %44 : vector<1x128x128xbf16> to vector<128x128xbf16>
    %cst_65 = arith.constant dense<0.000000e+00> : vector<64x128xf32>
    %46 = tpu.matmul %43, %45, %cst_65 {dimension_numbers = #tpu.dot_dimension_numbers<[1], [0], [0], [1], [0, 0, 1, 1], [], []>} : vector<64x128xbf16>, vector<128x128xbf16>, vector<64x128xf32> -> vector<64x128xf32>
    %47 = arith.addf %42, %46 : vector<64x128xf32>
    %c0_66 = arith.constant 0 : index
    %c0_67 = arith.constant 0 : index
    %48 = vector.load %arg6[%c0_66, %c0_67] : memref<64x128xf32, #tpu.memory_space<vmem>>, vector<64x128xf32>
    tpu.vector_store %arg6[%c0_66, %c0_67], %47 {strides = array<i32>} : memref<64x128xf32, #tpu.memory_space<vmem>>, vector<64x128xf32>,
    %c0_68 = arith.constant 0 : index
    %c1_69 = arith.constant 1 : index
    %c0_70 = arith.constant 0 : index
    %c0_71 = arith.constant 0 : index
    %c1_72 = arith.constant 1 : index
    %c0_73 = arith.constant 0 : index
    %49 = vector.load %arg2[%c0_68, %c1_69, %c0_70, %c0_71, %c1_72, %c0_73] : memref<1x2x2x9x9x128xbf16, #tpu.memory_space<vmem>>, vector<1x1x1x8x8x128xbf16>
    %50 = vector.shape_cast %49 : vector<1x1x1x8x8x128xbf16> to vector<8x8x128xbf16>
    %c0_74 = arith.constant 0 : index
    %c0_75 = arith.constant 0 : index
    %51 = vector.load %arg6[%c0_74, %c0_75] : memref<64x128xf32, #tpu.memory_space<vmem>>, vector<64x128xf32>
    %52 = vector.shape_cast %50 : vector<8x8x128xbf16> to vector<64x128xbf16>
    %c5 = arith.constant 5 : index
    %c0_76 = arith.constant 0 : index
    %c0_77 = arith.constant 0 : index
    %53 = vector.load %arg3[%c5, %c0_76, %c0_77] : memref<9x128x128xbf16, #tpu.memory_space<vmem>>, vector<1x128x128xbf16>
    %54 = vector.shape_cast %53 : vector<1x128x128xbf16> to vector<128x128xbf16>
    %cst_78 = arith.constant dense<0.000000e+00> : vector<64x128xf32>
    %55 = tpu.matmul %52, %54, %cst_78 {dimension_numbers = #tpu.dot_dimension_numbers<[1], [0], [0], [1], [0, 0, 1, 1], [], []>} : vector<64x128xbf16>, vector<128x128xbf16>, vector<64x128xf32> -> vector<64x128xf32>
    %56 = arith.addf %51, %55 : vector<64x128xf32>
    %c0_79 = arith.constant 0 : index
    %c0_80 = arith.constant 0 : index
    %57 = vector.load %arg6[%c0_79, %c0_80] : memref<64x128xf32, #tpu.memory_space<vmem>>, vector<64x128xf32>
    tpu.vector_store %arg6[%c0_79, %c0_80], %56 {strides = array<i32>} : memref<64x128xf32, #tpu.memory_space<vmem>>, vector<64x128xf32>,
    %c0_81 = arith.constant 0 : index
    %c0_82 = arith.constant 0 : index
    %c0_83 = arith.constant 0 : index
    %c1_84 = arith.constant 1 : index
    %c0_85 = arith.constant 0 : index
    %c0_86 = arith.constant 0 : index
    %58 = vector.load %arg2[%c0_81, %c0_82, %c0_83, %c1_84, %c0_85, %c0_86] : memref<1x2x2x9x9x128xbf16, #tpu.memory_space<vmem>>, vector<1x1x1x8x8x128xbf16>
    %59 = vector.shape_cast %58 : vector<1x1x1x8x8x128xbf16> to vector<8x8x128xbf16>
    %c0_87 = arith.constant 0 : index
    %c0_88 = arith.constant 0 : index
    %60 = vector.load %arg6[%c0_87, %c0_88] : memref<64x128xf32, #tpu.memory_space<vmem>>, vector<64x128xf32>
    %61 = vector.shape_cast %59 : vector<8x8x128xbf16> to vector<64x128xbf16>
    %c6 = arith.constant 6 : index
    %c0_89 = arith.constant 0 : index
    %c0_90 = arith.constant 0 : index
    %62 = vector.load %arg3[%c6, %c0_89, %c0_90] : memref<9x128x128xbf16, #tpu.memory_space<vmem>>, vector<1x128x128xbf16>
    %63 = vector.shape_cast %62 : vector<1x128x128xbf16> to vector<128x128xbf16>
    %cst_91 = arith.constant dense<0.000000e+00> : vector<64x128xf32>
    %64 = tpu.matmul %61, %63, %cst_91 {dimension_numbers = #tpu.dot_dimension_numbers<[1], [0], [0], [1], [0, 0, 1, 1], [], []>} : vector<64x128xbf16>, vector<128x128xbf16>, vector<64x128xf32> -> vector<64x128xf32>
    %65 = arith.addf %60, %64 : vector<64x128xf32>
    %c0_92 = arith.constant 0 : index
    %c0_93 = arith.constant 0 : index
    %66 = vector.load %arg6[%c0_92, %c0_93] : memref<64x128xf32, #tpu.memory_space<vmem>>, vector<64x128xf32>
    tpu.vector_store %arg6[%c0_92, %c0_93], %65 {strides = array<i32>} : memref<64x128xf32, #tpu.memory_space<vmem>>, vector<64x128xf32>,
    %c0_94 = arith.constant 0 : index
    %c0_95 = arith.constant 0 : index
    %c1_96 = arith.constant 1 : index
    %c1_97 = arith.constant 1 : index
    %c0_98 = arith.constant 0 : index
    %c0_99 = arith.constant 0 : index
    %67 = vector.load %arg2[%c0_94, %c0_95, %c1_96, %c1_97, %c0_98, %c0_99] : memref<1x2x2x9x9x128xbf16, #tpu.memory_space<vmem>>, vector<1x1x1x8x8x128xbf16>
    %68 = vector.shape_cast %67 : vector<1x1x1x8x8x128xbf16> to vector<8x8x128xbf16>
    %c0_100 = arith.constant 0 : index
    %c0_101 = arith.constant 0 : index
    %69 = vector.load %arg6[%c0_100, %c0_101] : memref<64x128xf32, #tpu.memory_space<vmem>>, vector<64x128xf32>
    %70 = vector.shape_cast %68 : vector<8x8x128xbf16> to vector<64x128xbf16>
    %c7 = arith.constant 7 : index
    %c0_102 = arith.constant 0 : index
    %c0_103 = arith.constant 0 : index
    %71 = vector.load %arg3[%c7, %c0_102, %c0_103] : memref<9x128x128xbf16, #tpu.memory_space<vmem>>, vector<1x128x128xbf16>
    %72 = vector.shape_cast %71 : vector<1x128x128xbf16> to vector<128x128xbf16>
    %cst_104 = arith.constant dense<0.000000e+00> : vector<64x128xf32>
    %73 = tpu.matmul %70, %72, %cst_104 {dimension_numbers = #tpu.dot_dimension_numbers<[1], [0], [0], [1], [0, 0, 1, 1], [], []>} : vector<64x128xbf16>, vector<128x128xbf16>, vector<64x128xf32> -> vector<64x128xf32>
    %74 = arith.addf %69, %73 : vector<64x128xf32>
    %c0_105 = arith.constant 0 : index
    %c0_106 = arith.constant 0 : index
    %75 = vector.load %arg6[%c0_105, %c0_106] : memref<64x128xf32, #tpu.memory_space<vmem>>, vector<64x128xf32>
    tpu.vector_store %arg6[%c0_105, %c0_106], %74 {strides = array<i32>} : memref<64x128xf32, #tpu.memory_space<vmem>>, vector<64x128xf32>,
    %c0_107 = arith.constant 0 : index
    %c0_108 = arith.constant 0 : index
    %c0_109 = arith.constant 0 : index
    %c1_110 = arith.constant 1 : index
    %c1_111 = arith.constant 1 : index
    %c0_112 = arith.constant 0 : index
    %76 = vector.load %arg2[%c0_107, %c0_108, %c0_109, %c1_110, %c1_111, %c0_112] : memref<1x2x2x9x9x128xbf16, #tpu.memory_space<vmem>>, vector<1x1x1x8x8x128xbf16>
    %77 = vector.shape_cast %76 : vector<1x1x1x8x8x128xbf16> to vector<8x8x128xbf16>
    %c0_113 = arith.constant 0 : index
    %c0_114 = arith.constant 0 : index
    %78 = vector.load %arg6[%c0_113, %c0_114] : memref<64x128xf32, #tpu.memory_space<vmem>>, vector<64x128xf32>
    %79 = vector.shape_cast %77 : vector<8x8x128xbf16> to vector<64x128xbf16>
    %c8 = arith.constant 8 : index
    %c0_115 = arith.constant 0 : index
    %c0_116 = arith.constant 0 : index
    %80 = vector.load %arg3[%c8, %c0_115, %c0_116] : memref<9x128x128xbf16, #tpu.memory_space<vmem>>, vector<1x128x128xbf16>
    %81 = vector.shape_cast %80 : vector<1x128x128xbf16> to vector<128x128xbf16>
    %cst_117 = arith.constant dense<0.000000e+00> : vector<64x128xf32>
    %82 = tpu.matmul %79, %81, %cst_117 {dimension_numbers = #tpu.dot_dimension_numbers<[1], [0], [0], [1], [0, 0, 1, 1], [], []>} : vector<64x128xbf16>, vector<128x128xbf16>, vector<64x128xf32> -> vector<64x128xf32>
    %83 = arith.addf %78, %82 : vector<64x128xf32>
    %c0_118 = arith.constant 0 : index
    %c0_119 = arith.constant 0 : index
    %84 = vector.load %arg6[%c0_118, %c0_119] : memref<64x128xf32, #tpu.memory_space<vmem>>, vector<64x128xf32>
    tpu.vector_store %arg6[%c0_118, %c0_119], %83 {strides = array<i32>} : memref<64x128xf32, #tpu.memory_space<vmem>>, vector<64x128xf32>,
    %c0_120 = arith.constant 0 : index
    %c0_121 = arith.constant 0 : index
    %85 = vector.load %arg6[%c0_120, %c0_121] : memref<64x128xf32, #tpu.memory_space<vmem>>, vector<64x128xf32>
    %86 = arith.truncf %85 : vector<64x128xf32> to vector<64x128xbf16>
    %c0_122 = arith.constant 0 : index
    %c0_123 = arith.constant 0 : index
    %c0_124 = arith.constant 0 : index
    %87 = vector.load %arg5[%c0_122, %c0_123, %c0_124] : memref<1x64x128xbf16, #tpu.memory_space<vmem>>, vector<1x64x128xbf16>
    %88 = vector.shape_cast %87 : vector<1x64x128xbf16> to vector<64x128xbf16>
    %89 = vector.shape_cast %86 : vector<64x128xbf16> to vector<1x64x128xbf16>
    tpu.vector_store %arg5[%c0_122, %c0_123, %c0_124], %89 {strides = array<i32>} : memref<1x64x128xbf16, #tpu.memory_space<vmem>>, vector<1x64x128xbf16>,
    return
  }
  func.func @transform_0(%arg0: i32, %arg1: i32) -> (i32, i32, i32, i32, i32, i32) {
    %c0_i32 = arith.constant 0 : i32
    %c0_i32_0 = arith.constant 0 : i32
    %c0_i32_1 = arith.constant 0 : i32
    %c0_i32_2 = arith.constant 0 : i32
    %c0_i32_3 = arith.constant 0 : i32
    %c0_i32_4 = arith.constant 0 : i32
    return %arg0, %c0_i32, %c0_i32_0, %c0_i32_1, %c0_i32_2, %c0_i32_3 : i32, i32, i32, i32, i32, i32
  }
  func.func @transform_1(%arg0: i32, %arg1: i32) -> (i32, i32, i32) {
    %c0_i32 = arith.constant 0 : i32
    %c0_i32_0 = arith.constant 0 : i32
    %c0_i32_1 = arith.constant 0 : i32
    return %c0_i32, %c0_i32_0, %arg1 : i32, i32, i32
  }
  func.func @transform_2(%arg0: i32, %arg1: i32) -> (i32, i32) {
    %c0_i32 = arith.constant 0 : i32
    %c0_i32_0 = arith.constant 0 : i32
    return %c0_i32, %arg1 : i32, i32
  }
  func.func @transform_3(%arg0: i32, %arg1: i32) -> (i32, i32, i32) {
    %c0_i32 = arith.constant 0 : i32
    %c0_i32_0 = arith.constant 0 : i32
    return %arg0, %c0_i32, %arg1 : i32, i32, i32
  }
}

</mosaic_0001>

<llo_original>
// kernel: tpu_custom_call.1
$region0: #{tpu_custom_call.1}
  #allocation0 [shape = 'u32[]', space=smem, size = 0x4, offset = 0x4, fixed_abs, tag = 'smem constant byte address 0x4 - core index']
  #allocation1 [shape = 'u32[72,128]{1,0:T(1,128)}', space=vmem, size = 0x9000, scoped, tag = 'internal scratch']
  #allocation2 [shape = 'f32[64,128]{1,0:T(8,128)}', space=vmem, size = 0x8000, scoped, tag = 'scratch operand']
  %s0 = inlined_call_operand.vmem [shape: bf16[2,2,2,9,9,128], index: 0, kind: input, shape index: {}]
  %s1 = inlined_call_operand.vmem [shape: bf16[9,128,128], index: 1, kind: input, shape index: {}]
  %s2 = inlined_call_operand.vmem [shape: f32[1,128], index: 2, kind: input, shape index: {}]
  %s3 = inlined_call_operand.hbm [shape: bf16[2,64,128], index: 3, kind: output, shape index: {}]
  %s4 = sld [smem:[#allocation0]]
  $region45: #{tpu_custom_call.1} parent=0
    _
  %s6 = ssub.s32 1, %s4
  %s7 = scalar_select 0, %s6, %s4
  $region1: #{tpu_custom_call.1} parent=0
    #allocation3 [shape = 'u8[32768]{0}', space=vmem, size = 0x8000, scoped, tag = 'output window, operand 0']
    #allocation4 [shape = 's32[2]{0}', space=sflag, size = 0x8, scoped, tag = 'scoped memory for tpu_custom_call.1']
    %8 = vsyncpa [#allocation4], 0
    %s9 = scalar_lea.sflag [#allocation4], 1
    %10 = vsyncpa %s9, 0
    loop: start=0, step=1, limit=4
    $region2: #{tpu_custom_call.1} parent=1 // loop_pre_header
      _
    $region3: #{tpu_custom_call.1} parent=1 // loop_header
      %s12 = sphi 0, %s16
      %p13 = scmp.ge.s32.totalorder %s12, 4
      %s19 = sphi 0, %s31
      %s20 = sphi 0, %s27
      %s21 = sphi 0, %s19
      %s22 = sphi 0, %s20
      %s23 = sphi 0, %s21
      %s24 = sphi 0, %s22
      %s34 = sphi 0, %s36
      %s37 = sphi 0, %s34
      %s38 = sphi 0, %s37
      %s54 = sphi 0, %s38
      %s60 = sphi 0, %s62
      %s63 = sphi 0, %s60
      %s64 = sphi 0, %s63
      %s80 = sphi 0, %s64
      %s86 = sphi 0, %s88
      %s89 = sphi 0, %s86
      %s90 = sphi 0, %s89
      %s106 = sphi 0, %s90
      %s114 = sphi 0, %s116
      %s117 = sphi 0, %s114
      %s118 = sphi 0, %s117
      %s134 = sphi 0, %s118
    $region4: #{tpu_custom_call.1} parent=1 // loop_header_branch
      %15 = sbr.rel (%p13) target = $region8
    $region5: #{tpu_custom_call.1} parent=1 // loop_body
      %s17 = ssub.s32 %s12, 1
      %s18 = ssub.s32 %s12, 2
      %s25 = sadd.s32 1, %s20
      %p26 = scmp.ge.s32.totalorder %s25, 1
      %s27 = scalar_select %p26, 0, %s25
      %s28 = sadd.s32 1, %s19
      %s29 = scalar_select %p26, %s28, %s19
      %p30 = scmp.ge.s32.totalorder %s29, 2
      %s31 = scalar_select %p30, 0, %s29
      %s32 = ssub.s32 %s19, %s31
      %p33 = scmp.eq.s32.totalorder %s32, 0
      %s35 = sadd.s32 %s34, 1
      %s36 = scalar_select %p33, %s34, %s35
      %p39 = pneg %p33
      %p40 = scmp.eq.s32.totalorder %s12, 1
      %p41 = por %p39, %p40
      %p42 = scmp.ne.s32.totalorder %s34, %s37
      %p43 = scmp.eq.s32.totalorder %s12, 0
      %p44 = por %p42, %p43
      %p45 = scmp.ne.s32.totalorder %s34, %s37
      %p46 = scmp.eq.s32.totalorder %s17, 1
      %p47 = por %p45, %p46
      %p48 = scmp.ne.s32.totalorder %s37, %s38
      %p49 = scmp.eq.s32.totalorder %s17, 0
      %p50 = por %p48, %p49
      %p51 = scmp.ne.s32.totalorder %s37, %s38
      %p52 = scmp.eq.s32.totalorder %s18, 1
      %p53 = por %p51, %p52
      %p55 = scmp.ne.s32.totalorder %s38, %s54
      %p56 = scmp.eq.s32.totalorder %s18, 0
      %p57 = por %p55, %p56
      %s58 = ssub.s32 %s20, %s27
      %p59 = scmp.eq.s32.totalorder %s58, 0
      %s61 = sadd.s32 %s60, 1
      %s62 = scalar_select %p59, %s60, %s61
      %p65 = pneg %p59
      %p66 = scmp.eq.s32.totalorder %s12, 1
      %p67 = por %p65, %p66
      %p68 = scmp.ne.s32.totalorder %s60, %s63
      %p69 = scmp.eq.s32.totalorder %s12, 0
      %p70 = por %p68, %p69
      %p71 = scmp.ne.s32.totalorder %s60, %s63
      %p72 = scmp.eq.s32.totalorder %s17, 1
      %p73 = por %p71, %p72
      %p74 = scmp.ne.s32.totalorder %s63, %s64
      %p75 = scmp.eq.s32.totalorder %s17, 0
      %p76 = por %p74, %p75
      %p77 = scmp.ne.s32.totalorder %s63, %s64
      %p78 = scmp.eq.s32.totalorder %s18, 1
      %p79 = por %p77, %p78
      %p81 = scmp.ne.s32.totalorder %s64, %s80
      %p82 = scmp.eq.s32.totalorder %s18, 0
      %p83 = por %p81, %p82
      %s84 = ssub.s32 %s20, %s27
      %p85 = scmp.eq.s32.totalorder %s84, 0
      %s87 = sadd.s32 %s86, 1
      %s88 = scalar_select %p85, %s86, %s87
      %p91 = pneg %p85
      %p92 = scmp.eq.s32.totalorder %s12, 1
      %p93 = por %p91, %p92
      %p94 = scmp.ne.s32.totalorder %s86, %s89
      %p95 = scmp.eq.s32.totalorder %s12, 0
      %p96 = por %p94, %p95
      %p97 = scmp.ne.s32.totalorder %s86, %s89
      %p98 = scmp.eq.s32.totalorder %s17, 1
      %p99 = por %p97, %p98
      %p100 = scmp.ne.s32.totalorder %s89, %s90
      %p101 = scmp.eq.s32.totalorder %s17, 0
      %p102 = por %p100, %p101
      %p103 = scmp.ne.s32.totalorder %s89, %s90
      %p104 = scmp.eq.s32.totalorder %s18, 1
      %p105 = por %p103, %p104
      %p107 = scmp.ne.s32.totalorder %s90, %s106
      %p108 = scmp.eq.s32.totalorder %s18, 0
      %p109 = por %p107, %p108
      %s110 = ssub.s32 %s19, %s31
      %s111 = ssub.s32 %s20, %s27
      %s112 = sor.u32 %s110, %s111
      %p113 = scmp.eq.s32.totalorder %s112, 0
      %s115 = sadd.s32 %s114, 1
      %s116 = scalar_select %p113, %s114, %s115
      %p119 = pneg %p113
      %p120 = scmp.eq.s32.totalorder %s12, 1
      %p121 = por %p119, %p120
      %p122 = scmp.ne.s32.totalorder %s114, %s117
      %p123 = scmp.eq.s32.totalorder %s12, 0
      %p124 = por %p122, %p123
      %p125 = scmp.ne.s32.totalorder %s114, %s117
      %p126 = scmp.eq.s32.totalorder %s17, 1
      %p127 = por %p125, %p126
      %p128 = scmp.ne.s32.totalorder %s117, %s118
      %p129 = scmp.eq.s32.totalorder %s17, 0
      %p130 = por %p128, %p129
      %p131 = scmp.ne.s32.totalorder %s117, %s118
      %p132 = scmp.eq.s32.totalorder %s18, 1
      %p133 = por %p131, %p132
      %p135 = scmp.ne.s32.totalorder %s118, %s134
      %p136 = scmp.eq.s32.totalorder %s18, 0
      %p137 = por %p135, %p136
      %p138 = scmp.le.s32.totalorder 1, %s12
      %p139 = scmp.lt.s32.totalorder %s12, 3
      %p140 = pnand %p138, %p139
      %p141 = pneg %p140
      // Predicated region
      $region9: #{tpu_custom_call.1} parent=5 // pred_check
        _
      $region10: #{tpu_custom_call.1} parent=5 // pred_check_branch
        %143 = sbr.rel (%p140) target = $region12
      $region11: #{tpu_custom_call.1} parent=5 // pred_region
        %s144 = ssub.s32 %s12, 1
        // Predicated region
        $region13: #{tpu_custom_call.1} parent=11 // pred_check
          %p145 = pneg %p76
        $region14: #{tpu_custom_call.1} parent=11 // pred_check_branch
          %147 = sbr.rel (%p145) target = $region16
        $region15: #{tpu_custom_call.1} parent=11 // pred_region
          %p148 = scmp.lt.s32.totalorder %s22, 0
          %s149 = scalar_select %p148, %s22, 0
          %s150 = smul.addr %s149, 4
          %s151 = scalar_lea.vmem %s1, %s150
        $region16: #{tpu_custom_call.1} parent=11 // pred_fallthru
          _
        // Predicated region
        $region17: #{tpu_custom_call.1} parent=11 // pred_check
          %p152 = pneg %p102
        $region18: #{tpu_custom_call.1} parent=11 // pred_check_branch
          %154 = sbr.rel (%p152) target = $region20
        $region19: #{tpu_custom_call.1} parent=11 // pred_region
          %p155 = scmp.lt.s32.totalorder %s22, 0
          %s156 = scalar_select %p155, %s22, 0
          %s157 = scalar_lea.vmem %s2, %s156
        $region20: #{tpu_custom_call.1} parent=11 // pred_fallthru
          _
      $region12: #{tpu_custom_call.1} parent=5 // pred_fallthru
        _
      %p158 = scmp.lt.s32.totalorder %s12, 2
      // Predicated region
      $region21: #{tpu_custom_call.1} parent=5 // pred_check
        %p159 = pneg %p158
      $region22: #{tpu_custom_call.1} parent=5 // pred_check_branch
        %161 = sbr.rel (%p159) target = $region24
      $region23: #{tpu_custom_call.1} parent=5 // pred_region
        // Predicated region
        $region25: #{tpu_custom_call.1} parent=23 // pred_check
          %p162 = pneg %p44
        $region26: #{tpu_custom_call.1} parent=23 // pred_check_branch
          %164 = sbr.rel (%p162) target = $region28
        $region27: #{tpu_custom_call.1} parent=23 // pred_region
          %p165 = scmp.lt.s32.totalorder %s19, 1
          %s166 = scalar_select %p165, %s19, 1
          %s167 = smul.addr %s166, 72
          %s168 = smul.addr %s167, 4
          %s169 = scalar_lea.vmem %s0, %s168
        $region28: #{tpu_custom_call.1} parent=23 // pred_fallthru
          _
      $region24: #{tpu_custom_call.1} parent=5 // pred_fallthru
        _
      %p170 = scmp.le.s32.totalorder 1, %s12
      %p171 = scmp.lt.s32.totalorder %s12, 3
      %p172 = pnand %p170, %p171
      %p173 = pneg %p172
      // Predicated region
      $region29: #{tpu_custom_call.1} parent=5 // pred_check
        _
      $region30: #{tpu_custom_call.1} parent=5 // pred_check_branch
        %175 = sbr.rel (%p172) target = $region32
      $region31: #{tpu_custom_call.1} parent=5 // pred_region
        %s176 = ssub.s32 %s12, 1
        %p177 = scmp.lt.s32.totalorder %s21, 1
        %s178 = scalar_select %p177, %s21, 1
        %s179 = smul.addr %s178, 72
        %s180 = smul.addr %s179, 4
        %s181 = scalar_lea.vmem %s0, %s180
        %p182 = pneg %p50
        %p183 = pneg %p47
        %p184 = scmp.lt.s32.totalorder %s22, 0
        %s185 = scalar_select %p184, %s22, 0
        %s186 = smul.addr %s185, 4
        %s187 = scalar_lea.vmem %s1, %s186
        %p188 = pneg %p76
        %p189 = pneg %p73
        %p190 = scmp.lt.s32.totalorder %s22, 0
        %s191 = scalar_select %p190, %s22, 0
        %s192 = scalar_lea.vmem %s2, %s191
        %p193 = pneg %p102
        %p194 = pneg %p99
        %p195 = pneg %p130
        %p196 = pneg %p127
        %s197 = sand.u32 %s117, 1
        %s198 = scalar_lea.sflag [#allocation4], %s197
        %s199 = sand.u32 %s117, 1
        %s200 = smul.addr %s199, 32
        %s201 = scalar_lea.vmem [#allocation3], %s200
        %p202 = scmp.lt.s32.totalorder %s21, 1
        %s203 = scalar_select %p202, %s21, 1
        %s204 = smul.addr %s203, 72
        %s205 = smul.addr %s204, 4
        %s206 = scalar_lea.vmem %s0, %s205
        %p207 = scmp.lt.s32.totalorder %s22, 0
        %s208 = scalar_select %p207, %s22, 0
        %s209 = smul.addr %s208, 4
        %s210 = scalar_lea.vmem %s1, %s209
        %p211 = scmp.lt.s32.totalorder %s22, 0
        %s212 = scalar_select %p211, %s22, 0
        %s213 = scalar_lea.vmem %s2, %s212
        %v214 = vld [vmem:[%s213] sm:$0x1]
        %v216 = vperm.slane %v214, 0
        %218 = vst [vmem:[#allocation2] sm:$0xff] %v216
        %219 = vst [vmem:[#allocation2 + $0x8] sm:$0xff] %v216
        %220 = vst [vmem:[#allocation2 + $0x10] sm:$0xff] %v216
        %221 = vst [vmem:[#allocation2 + $0x18] sm:$0xff] %v216
        %222 = vst [vmem:[#allocation2 + $0x20] sm:$0xff] %v216
        %223 = vst [vmem:[#allocation2 + $0x28] sm:$0xff] %v216
        %224 = vst [vmem:[#allocation2 + $0x30] sm:$0xff] %v216
        %225 = vst [vmem:[#allocation2 + $0x38] sm:$0xff] %v216
        %v226 = vld [vmem:[%s206] sm:$0xf]
        %v227 = vld [vmem:[%s206 + $0x8] sm:$0xf]
        %v228 = vld [vmem:[%s206 + $0x10] sm:$0xf]
        %v229 = vld [vmem:[%s206 + $0x18] sm:$0xf]
        %v230 = vld [vmem:[%s206 + $0x20] sm:$0xf]
        %v231 = vld [vmem:[%s206 + $0x28] sm:$0xf]
        %v232 = vld [vmem:[%s206 + $0x30] sm:$0xf]
        %v233 = vld [vmem:[%s206 + $0x38] sm:$0xf]
        %v234 = vld [vmem:[#allocation2] sm:$0xff]
        %v235 = vld [vmem:[#allocation2 + $0x8] sm:$0xff]
        %v236 = vld [vmem:[#allocation2 + $0x10] sm:$0xff]
        %v237 = vld [vmem:[#allocation2 + $0x18] sm:$0xff]
        %v238 = vld [vmem:[#allocation2 + $0x20] sm:$0xff]
        %v239 = vld [vmem:[#allocation2 + $0x28] sm:$0xff]
        %v240 = vld [vmem:[#allocation2 + $0x30] sm:$0xff]
        %v241 = vld [vmem:[#allocation2 + $0x38] sm:$0xff]
        %v242 = vld [vmem:[%s210] sm:$0xf]
        %v243 = vld [vmem:[%s210 + $0x4] sm:$0xf]
        %v244 = vld [vmem:[%s210 + $0x8] sm:$0xf]
        %v245 = vld [vmem:[%s210 + $0xc] sm:$0xf]
        %v246 = vld [vmem:[%s210 + $0x10] sm:$0xf]
        %v247 = vld [vmem:[%s210 + $0x14] sm:$0xf]
        %v248 = vld [vmem:[%s210 + $0x18] sm:$0xf]
        %v249 = vld [vmem:[%s210 + $0x1c] sm:$0xf]
        %v250 = vld [vmem:[%s210 + $0x20] sm:$0xf]
        %v251 = vld [vmem:[%s210 + $0x24] sm:$0xf]
        %v252 = vld [vmem:[%s210 + $0x28] sm:$0xf]
        %v253 = vld [vmem:[%s210 + $0x2c] sm:$0xf]
        %v254 = vld [vmem:[%s210 + $0x30] sm:$0xf]
        %v255 = vld [vmem:[%s210 + $0x34] sm:$0xf]
        %v256 = vld [vmem:[%s210 + $0x38] sm:$0xf]
        %v257 = vld [vmem:[%s210 + $0x3c] sm:$0xf]
        %v266 = vunpack.c.l.b16 %v226
        %v267 = vunpack.c.l.b16 %v227
        %v268 = vunpack.c.l.b16 %v228
        %v269 = vunpack.c.l.b16 %v229
        %v270 = vunpack.c.l.b16 %v230
        %v271 = vunpack.c.l.b16 %v231
        %v272 = vunpack.c.l.b16 %v232
        %v273 = vunpack.c.l.b16 %v233
        %v274 = vpack.c.b16 %v267, %v266
        %v275 = vpack.c.b16 %v269, %v268
        %v276 = vpack.c.b16 %v271, %v270
        %v277 = vpack.c.b16 %v273, %v272
        %v298 = vunpack.c.l.b16 %v242
        %v299 = vunpack.c.l.b16 %v243
        %v300 = vunpack.c.l.b16 %v244
        %v301 = vunpack.c.l.b16 %v245
        %v302 = vunpack.c.l.b16 %v246
        %v303 = vunpack.c.l.b16 %v247
        %v304 = vunpack.c.l.b16 %v248
        %v305 = vunpack.c.l.b16 %v249
        %v306 = vunpack.c.l.b16 %v250
        %v307 = vunpack.c.l.b16 %v251
        %v308 = vunpack.c.l.b16 %v252
        %v309 = vunpack.c.l.b16 %v253
        %v310 = vunpack.c.l.b16 %v254
        %v311 = vunpack.c.l.b16 %v255
        %v312 = vunpack.c.l.b16 %v256
        %v313 = vunpack.c.l.b16 %v257
        %v314 = vpack.c.b16 %v299, %v298
        %v315 = vpack.c.b16 %v301, %v300
        %v316 = vpack.c.b16 %v303, %v302
        %v317 = vpack.c.b16 %v305, %v304
        %v318 = vpack.c.b16 %v307, %v306
        %v319 = vpack.c.b16 %v309, %v308
        %v320 = vpack.c.b16 %v311, %v310
        %v321 = vpack.c.b16 %v313, %v312
        %330 = vmatpush.bf16.msra.mxu0 %v321
        %331 = vmatpush.bf16.msra.mxu0 %v320
        %332 = vmatpush.bf16.msra.mxu0 %v319
        %333 = vmatpush.bf16.msra.mxu0 %v318
        %334 = vmatpush.bf16.msra.mxu0 %v317
        %335 = vmatpush.bf16.msra.mxu0 %v316
        %336 = vmatpush.bf16.msra.mxu0 %v315
        %337 = vmatpush.bf16.msra.mxu0 %v314
        %338 = vmatmul.bf16.gmra.mxu0 %v274
        %v339 = vpop.f32.mrf.mxu0
        %v340 = vadd.f32 0.0, %v339
        %v341 = vpop.f32.mrf.mxu0
        %v342 = vadd.f32 0.0, %v341
        %343 = vmatmul.bf16.gmra.mxu0 %v275
        %v344 = vpop.f32.mrf.mxu0
        %v345 = vadd.f32 0.0, %v344
        %v346 = vpop.f32.mrf.mxu0
        %v347 = vadd.f32 0.0, %v346
        %348 = vmatmul.bf16.gmra.mxu0 %v276
        %v349 = vpop.f32.mrf.mxu0
        %v350 = vadd.f32 0.0, %v349
        %v351 = vpop.f32.mrf.mxu0
        %v352 = vadd.f32 0.0, %v351
        %353 = vmatmul.bf16.gmra.mxu0 %v277
        %v354 = vpop.f32.mrf.mxu0
        %v355 = vadd.f32 0.0, %v354
        %v356 = vpop.f32.mrf.mxu0
        %v357 = vadd.f32 0.0, %v356
        %358 = vdwg.mxu0
        %v359 = vadd.f32 %v234, %v340
        %v360 = vadd.f32 %v235, %v342
        %v361 = vadd.f32 %v236, %v345
        %v362 = vadd.f32 %v237, %v347
        %v363 = vadd.f32 %v238, %v350
        %v364 = vadd.f32 %v239, %v352
        %v365 = vadd.f32 %v240, %v355
        %v366 = vadd.f32 %v241, %v357
        %367 = vst [vmem:[#allocation2] sm:$0xff] %v359
        %368 = vst [vmem:[#allocation2 + $0x8] sm:$0xff] %v360
        %369 = vst [vmem:[#allocation2 + $0x10] sm:$0xff] %v361
        %370 = vst [vmem:[#allocation2 + $0x18] sm:$0xff] %v362
        %371 = vst [vmem:[#allocation2 + $0x20] sm:$0xff] %v363
        %372 = vst [vmem:[#allocation2 + $0x28] sm:$0xff] %v364
        %373 = vst [vmem:[#allocation2 + $0x30] sm:$0xff] %v365
        %374 = vst [vmem:[#allocation2 + $0x38] sm:$0xff] %v366
        %s375 = scalar_lea.vmem %s206, 72
        %v376 = vld [vmem:[%s375] sm:$0xf]
        %v377 = vld [vmem:[%s375 + $0x8] sm:$0xf]
        %v378 = vld [vmem:[%s375 + $0x10] sm:$0xf]
        %v379 = vld [vmem:[%s375 + $0x18] sm:$0xf]
        %v380 = vld [vmem:[%s375 + $0x20] sm:$0xf]
        %v381 = vld [vmem:[%s375 + $0x28] sm:$0xf]
        %v382 = vld [vmem:[%s375 + $0x30] sm:$0xf]
        %v383 = vld [vmem:[%s375 + $0x38] sm:$0xf]
        %v384 = vld [vmem:[#allocation2] sm:$0xff]
        %v385 = vld [vmem:[#allocation2 + $0x8] sm:$0xff]
        %v386 = vld [vmem:[#allocation2 + $0x10] sm:$0xff]
        %v387 = vld [vmem:[#allocation2 + $0x18] sm:$0xff]
        %v388 = vld [vmem:[#allocation2 + $0x20] sm:$0xff]
        %v389 = vld [vmem:[#allocation2 + $0x28] sm:$0xff]
        %v390 = vld [vmem:[#allocation2 + $0x30] sm:$0xff]
        %v391 = vld [vmem:[#allocation2 + $0x38] sm:$0xff]
        %s392 = scalar_lea.vmem %s210, 64
        %v393 = vld [vmem:[%s392] sm:$0xf]
        %v394 = vld [vmem:[%s392 + $0x4] sm:$0xf]
        %v395 = vld [vmem:[%s392 + $0x8] sm:$0xf]
        %v396 = vld [vmem:[%s392 + $0xc] sm:$0xf]
        %v397 = vld [vmem:[%s392 + $0x10] sm:$0xf]
        %v398 = vld [vmem:[%s392 + $0x14] sm:$0xf]
        %v399 = vld [vmem:[%s392 + $0x18] sm:$0xf]
        %v400 = vld [vmem:[%s392 + $0x1c] sm:$0xf]
        %v401 = vld [vmem:[%s392 + $0x20] sm:$0xf]
        %v402 = vld [vmem:[%s392 + $0x24] sm:$0xf]
        %v403 = vld [vmem:[%s392 + $0x28] sm:$0xf]
        %v404 = vld [vmem:[%s392 + $0x2c] sm:$0xf]
        %v405 = vld [vmem:[%s392 + $0x30] sm:$0xf]
        %v406 = vld [vmem:[%s392 + $0x34] sm:$0xf]
        %v407 = vld [vmem:[%s392 + $0x38] sm:$0xf]
        %v408 = vld [vmem:[%s392 + $0x3c] sm:$0xf]
        %v417 = vunpack.c.l.b16 %v376
        %v418 = vunpack.c.l.b16 %v377
        %v419 = vunpack.c.l.b16 %v378
        %v420 = vunpack.c.l.b16 %v379
        %v421 = vunpack.c.l.b16 %v380
        %v422 = vunpack.c.l.b16 %v381
        %v423 = vunpack.c.l.b16 %v382
        %v424 = vunpack.c.l.b16 %v383
        %v425 = vpack.c.b16 %v418, %v417
        %v426 = vpack.c.b16 %v420, %v419
        %v427 = vpack.c.b16 %v422, %v421
        %v428 = vpack.c.b16 %v424, %v423
        %v449 = vunpack.c.l.b16 %v393
        %v450 = vunpack.c.l.b16 %v394
        %v451 = vunpack.c.l.b16 %v395
        %v452 = vunpack.c.l.b16 %v396
        %v453 = vunpack.c.l.b16 %v397
        %v454 = vunpack.c.l.b16 %v398
        %v455 = vunpack.c.l.b16 %v399
        %v456 = vunpack.c.l.b16 %v400
        %v457 = vunpack.c.l.b16 %v401
        %v458 = vunpack.c.l.b16 %v402
        %v459 = vunpack.c.l.b16 %v403
        %v460 = vunpack.c.l.b16 %v404
        %v461 = vunpack.c.l.b16 %v405
        %v462 = vunpack.c.l.b16 %v406
        %v463 = vunpack.c.l.b16 %v407
        %v464 = vunpack.c.l.b16 %v408
        %v465 = vpack.c.b16 %v450, %v449
        %v466 = vpack.c.b16 %v452, %v451
        %v467 = vpack.c.b16 %v454, %v453
        %v468 = vpack.c.b16 %v456, %v455
        %v469 = vpack.c.b16 %v458, %v457
        %v470 = vpack.c.b16 %v460, %v459
        %v471 = vpack.c.b16 %v462, %v461
        %v472 = vpack.c.b16 %v464, %v463
        %481 = vmatpush.bf16.msra.mxu0 %v472
        %482 = vmatpush.bf16.msra.mxu0 %v471
        %483 = vmatpush.bf16.msra.mxu0 %v470
        %484 = vmatpush.bf16.msra.mxu0 %v469
        %485 = vmatpush.bf16.msra.mxu0 %v468
        %486 = vmatpush.bf16.msra.mxu0 %v467
        %487 = vmatpush.bf16.msra.mxu0 %v466
        %488 = vmatpush.bf16.msra.mxu0 %v465
        %489 = vmatmul.bf16.gmra.mxu0 %v425
        %v490 = vpop.f32.mrf.mxu0
        %v491 = vadd.f32 0.0, %v490
        %v492 = vpop.f32.mrf.mxu0
        %v493 = vadd.f32 0.0, %v492
        %494 = vmatmul.bf16.gmra.mxu0 %v426
        %v495 = vpop.f32.mrf.mxu0
        %v496 = vadd.f32 0.0, %v495
        %v497 = vpop.f32.mrf.mxu0
        %v498 = vadd.f32 0.0, %v497
        %499 = vmatmul.bf16.gmra.mxu0 %v427
        %v500 = vpop.f32.mrf.mxu0
        %v501 = vadd.f32 0.0, %v500
        %v502 = vpop.f32.mrf.mxu0
        %v503 = vadd.f32 0.0, %v502
        %504 = vmatmul.bf16.gmra.mxu0 %v428
        %v505 = vpop.f32.mrf.mxu0
        %v506 = vadd.f32 0.0, %v505
        %v507 = vpop.f32.mrf.mxu0
        %v508 = vadd.f32 0.0, %v507
        %509 = vdwg.mxu0
        %v510 = vadd.f32 %v384, %v491
        %v511 = vadd.f32 %v385, %v493
        %v512 = vadd.f32 %v386, %v496
        %v513 = vadd.f32 %v387, %v498
        %v514 = vadd.f32 %v388, %v501
        %v515 = vadd.f32 %v389, %v503
        %v516 = vadd.f32 %v390, %v506
        %v517 = vadd.f32 %v391, %v508
        %518 = vst [vmem:[#allocation2] sm:$0xff] %v510
        %519 = vst [vmem:[#allocation2 + $0x8] sm:$0xff] %v511
        %520 = vst [vmem:[#allocation2 + $0x10] sm:$0xff] %v512
        %521 = vst [vmem:[#allocation2 + $0x18] sm:$0xff] %v513
        %522 = vst [vmem:[#allocation2 + $0x20] sm:$0xff] %v514
        %523 = vst [vmem:[#allocation2 + $0x28] sm:$0xff] %v515
        %524 = vst [vmem:[#allocation2 + $0x30] sm:$0xff] %v516
        %525 = vst [vmem:[#allocation2 + $0x38] sm:$0xff] %v517
        %v526 = vld [vmem:[%s206] sm:$0xf]
        %v527 = vld [vmem:[%s206 + $0x4] sm:$0x1]
        %v528 = vld [vmem:[%s206 + $0x8] sm:$0xf]
        %v529 = vld [vmem:[%s206 + $0xc] sm:$0x1]
        %v530 = vld [vmem:[%s206 + $0x10] sm:$0xf]
        %v531 = vld [vmem:[%s206 + $0x14] sm:$0x1]
        %v532 = vld [vmem:[%s206 + $0x18] sm:$0xf]
        %v533 = vld [vmem:[%s206 + $0x1c] sm:$0x1]
        %v534 = vld [vmem:[%s206 + $0x20] sm:$0xf]
        %v535 = vld [vmem:[%s206 + $0x24] sm:$0x1]
        %v536 = vld [vmem:[%s206 + $0x28] sm:$0xf]
        %v537 = vld [vmem:[%s206 + $0x2c] sm:$0x1]
        %v538 = vld [vmem:[%s206 + $0x30] sm:$0xf]
        %v539 = vld [vmem:[%s206 + $0x34] sm:$0x1]
        %v540 = vld [vmem:[%s206 + $0x38] sm:$0xf]
        %v541 = vld [vmem:[%s206 + $0x3c] sm:$0x1]
        %v542 = vld [vmem:[#allocation2] sm:$0xff]
        %v543 = vld [vmem:[#allocation2 + $0x8] sm:$0xff]
        %v544 = vld [vmem:[#allocation2 + $0x10] sm:$0xff]
        %v545 = vld [vmem:[#allocation2 + $0x18] sm:$0xff]
        %v546 = vld [vmem:[#allocation2 + $0x20] sm:$0xff]
        %v547 = vld [vmem:[#allocation2 + $0x28] sm:$0xff]
        %v548 = vld [vmem:[#allocation2 + $0x30] sm:$0xff]
        %v549 = vld [vmem:[#allocation2 + $0x38] sm:$0xff]
        %vm550 = vsmask.f32 3328
        %vm551 = vsmask.f32 7440
        %vm552 = vmor %vm550, %vm551
        %v554 = vshrl.u32 %v526, 16
        %v556 = vrot.slane %v554, 4
        %v557 = vshll.u32 %v526, 16
        %v559 = vrot.slane %v557, 5
        %v560 = vor.u32 %v556, %v559
        %v561 = vrot.slane %v560, 4
        %v563 = vshll.u32 %v527, 16
        %v565 = vrot.slane %v563, 5
        %v566 = vsel %vm552, %v561, %v565
        %v568 = vshrl.u32 %v528, 16
        %v570 = vrot.slane %v568, 4
        %v571 = vshll.u32 %v528, 16
        %v573 = vrot.slane %v571, 5
        %v574 = vor.u32 %v570, %v573
        %v575 = vrot.slane %v574, 4
        %v577 = vshll.u32 %v529, 16
        %v579 = vrot.slane %v577, 5
        %v580 = vsel %vm552, %v575, %v579
        %v582 = vshrl.u32 %v530, 16
        %v584 = vrot.slane %v582, 4
        %v585 = vshll.u32 %v530, 16
        %v587 = vrot.slane %v585, 5
        %v588 = vor.u32 %v584, %v587
        %v589 = vrot.slane %v588, 4
        %v591 = vshll.u32 %v531, 16
        %v593 = vrot.slane %v591, 5
        %v594 = vsel %vm552, %v589, %v593
        %v596 = vshrl.u32 %v532, 16
        %v598 = vrot.slane %v596, 4
        %v599 = vshll.u32 %v532, 16
        %v601 = vrot.slane %v599, 5
        %v602 = vor.u32 %v598, %v601
        %v603 = vrot.slane %v602, 4
        %v605 = vshll.u32 %v533, 16
        %v607 = vrot.slane %v605, 5
        %v608 = vsel %vm552, %v603, %v607
        %v610 = vshrl.u32 %v534, 16
        %v612 = vrot.slane %v610, 4
        %v613 = vshll.u32 %v534, 16
        %v615 = vrot.slane %v613, 5
        %v616 = vor.u32 %v612, %v615
        %v617 = vrot.slane %v616, 4
        %v619 = vshll.u32 %v535, 16
        %v621 = vrot.slane %v619, 5
        %v622 = vsel %vm552, %v617, %v621
        %v624 = vshrl.u32 %v536, 16
        %v626 = vrot.slane %v624, 4
        %v627 = vshll.u32 %v536, 16
        %v629 = vrot.slane %v627, 5
        %v630 = vor.u32 %v626, %v629
        %v631 = vrot.slane %v630, 4
        %v633 = vshll.u32 %v537, 16
        %v635 = vrot.slane %v633, 5
        %v636 = vsel %vm552, %v631, %v635
        %v638 = vshrl.u32 %v538, 16
        %v640 = vrot.slane %v638, 4
        %v641 = vshll.u32 %v538, 16
        %v643 = vrot.slane %v641, 5
        %v644 = vor.u32 %v640, %v643
        %v645 = vrot.slane %v644, 4
        %v647 = vshll.u32 %v539, 16
        %v649 = vrot.slane %v647, 5
        %v650 = vsel %vm552, %v645, %v649
        %v652 = vshrl.u32 %v540, 16
        %v654 = vrot.slane %v652, 4
        %v655 = vshll.u32 %v540, 16
        %v657 = vrot.slane %v655, 5
        %v658 = vor.u32 %v654, %v657
        %v659 = vrot.slane %v658, 4
        %v661 = vshll.u32 %v541, 16
        %v663 = vrot.slane %v661, 5
        %v664 = vsel %vm552, %v659, %v663
        %s665 = scalar_lea.vmem %s210, 128
        %v666 = vld [vmem:[%s665] sm:$0xf]
        %v667 = vld [vmem:[%s665 + $0x4] sm:$0xf]
        %v668 = vld [vmem:[%s665 + $0x8] sm:$0xf]
        %v669 = vld [vmem:[%s665 + $0xc] sm:$0xf]
        %v670 = vld [vmem:[%s665 + $0x10] sm:$0xf]
        %v671 = vld [vmem:[%s665 + $0x14] sm:$0xf]
        %v672 = vld [vmem:[%s665 + $0x18] sm:$0xf]
        %v673 = vld [vmem:[%s665 + $0x1c] sm:$0xf]
        %v674 = vld [vmem:[%s665 + $0x20] sm:$0xf]
        %v675 = vld [vmem:[%s665 + $0x24] sm:$0xf]
        %v676 = vld [vmem:[%s665 + $0x28] sm:$0xf]
        %v677 = vld [vmem:[%s665 + $0x2c] sm:$0xf]
        %v678 = vld [vmem:[%s665 + $0x30] sm:$0xf]
        %v679 = vld [vmem:[%s665 + $0x34] sm:$0xf]
        %v680 = vld [vmem:[%s665 + $0x38] sm:$0xf]
        %v681 = vld [vmem:[%s665 + $0x3c] sm:$0xf]
        %v682 = vunpack.c.l.b16 %v566
        %v683 = vunpack.c.l.b16 %v580
        %v684 = vunpack.c.l.b16 %v594
        %v685 = vunpack.c.l.b16 %v608
        %v686 = vunpack.c.l.b16 %v622
        %v687 = vunpack.c.l.b16 %v636
        %v688 = vunpack.c.l.b16 %v650
        %v689 = vunpack.c.l.b16 %v664
        %v690 = vpack.c.b16 %v683, %v682
        %v691 = vpack.c.b16 %v685, %v684
        %v692 = vpack.c.b16 %v687, %v686
        %v693 = vpack.c.b16 %v689, %v688
        %v714 = vunpack.c.l.b16 %v666
        %v715 = vunpack.c.l.b16 %v667
        %v716 = vunpack.c.l.b16 %v668
        %v717 = vunpack.c.l.b16 %v669
        %v718 = vunpack.c.l.b16 %v670
        %v719 = vunpack.c.l.b16 %v671
        %v720 = vunpack.c.l.b16 %v672
        %v721 = vunpack.c.l.b16 %v673
        %v722 = vunpack.c.l.b16 %v674
        %v723 = vunpack.c.l.b16 %v675
        %v724 = vunpack.c.l.b16 %v676
        %v725 = vunpack.c.l.b16 %v677
        %v726 = vunpack.c.l.b16 %v678
        %v727 = vunpack.c.l.b16 %v679
        %v728 = vunpack.c.l.b16 %v680
        %v729 = vunpack.c.l.b16 %v681
        %v730 = vpack.c.b16 %v715, %v714
        %v731 = vpack.c.b16 %v717, %v716
        %v732 = vpack.c.b16 %v719, %v718
        %v733 = vpack.c.b16 %v721, %v720
        %v734 = vpack.c.b16 %v723, %v722
        %v735 = vpack.c.b16 %v725, %v724
        %v736 = vpack.c.b16 %v727, %v726
        %v737 = vpack.c.b16 %v729, %v728
        %746 = vmatpush.bf16.msra.mxu0 %v737
        %747 = vmatpush.bf16.msra.mxu0 %v736
        %748 = vmatpush.bf16.msra.mxu0 %v735
        %749 = vmatpush.bf16.msra.mxu0 %v734
        %750 = vmatpush.bf16.msra.mxu0 %v733
        %751 = vmatpush.bf16.msra.mxu0 %v732
        %752 = vmatpush.bf16.msra.mxu0 %v731
        %753 = vmatpush.bf16.msra.mxu0 %v730
        %754 = vmatmul.bf16.gmra.mxu0 %v690
        %v755 = vpop.f32.mrf.mxu0
        %v756 = vadd.f32 0.0, %v755
        %v757 = vpop.f32.mrf.mxu0
        %v758 = vadd.f32 0.0, %v757
        %759 = vmatmul.bf16.gmra.mxu0 %v691
        %v760 = vpop.f32.mrf.mxu0
        %v761 = vadd.f32 0.0, %v760
        %v762 = vpop.f32.mrf.mxu0
        %v763 = vadd.f32 0.0, %v762
        %764 = vmatmul.bf16.gmra.mxu0 %v692
        %v765 = vpop.f32.mrf.mxu0
        %v766 = vadd.f32 0.0, %v765
        %v767 = vpop.f32.mrf.mxu0
        %v768 = vadd.f32 0.0, %v767
        %769 = vmatmul.bf16.gmra.mxu0 %v693
        %v770 = vpop.f32.mrf.mxu0
        %v771 = vadd.f32 0.0, %v770
        %v772 = vpop.f32.mrf.mxu0
        %v773 = vadd.f32 0.0, %v772
        %774 = vdwg.mxu0
        %v775 = vadd.f32 %v542, %v756
        %v776 = vadd.f32 %v543, %v758
        %v777 = vadd.f32 %v544, %v761
        %v778 = vadd.f32 %v545, %v763
        %v779 = vadd.f32 %v546, %v766
        %v780 = vadd.f32 %v547, %v768
        %v781 = vadd.f32 %v548, %v771
        %v782 = vadd.f32 %v549, %v773
        %783 = vst [vmem:[#allocation2] sm:$0xff] %v775
        %784 = vst [vmem:[#allocation2 + $0x8] sm:$0xff] %v776
        %785 = vst [vmem:[#allocation2 + $0x10] sm:$0xff] %v777
        %786 = vst [vmem:[#allocation2 + $0x18] sm:$0xff] %v778
        %787 = vst [vmem:[#allocation2 + $0x20] sm:$0xff] %v779
        %788 = vst [vmem:[#allocation2 + $0x28] sm:$0xff] %v780
        %789 = vst [vmem:[#allocation2 + $0x30] sm:$0xff] %v781
        %790 = vst [vmem:[#allocation2 + $0x38] sm:$0xff] %v782
        %s791 = scalar_lea.vmem %s206, 144
        %v792 = vld [vmem:[%s791] sm:$0xf]
        %v793 = vld [vmem:[%s791 + $0x8] sm:$0xf]
        %v794 = vld [vmem:[%s791 + $0x10] sm:$0xf]
        %v795 = vld [vmem:[%s791 + $0x18] sm:$0xf]
        %v796 = vld [vmem:[%s791 + $0x20] sm:$0xf]
        %v797 = vld [vmem:[%s791 + $0x28] sm:$0xf]
        %v798 = vld [vmem:[%s791 + $0x30] sm:$0xf]
        %v799 = vld [vmem:[%s791 + $0x38] sm:$0xf]
        %v800 = vld [vmem:[#allocation2] sm:$0xff]
        %v801 = vld [vmem:[#allocation2 + $0x8] sm:$0xff]
        %v802 = vld [vmem:[#allocation2 + $0x10] sm:$0xff]
        %v803 = vld [vmem:[#allocation2 + $0x18] sm:$0xff]
        %v804 = vld [vmem:[#allocation2 + $0x20] sm:$0xff]
        %v805 = vld [vmem:[#allocation2 + $0x28] sm:$0xff]
        %v806 = vld [vmem:[#allocation2 + $0x30] sm:$0xff]
        %v807 = vld [vmem:[#allocation2 + $0x38] sm:$0xff]
        %s808 = scalar_lea.vmem %s210, 192
        %v809 = vld [vmem:[%s808] sm:$0xf]
        %v810 = vld [vmem:[%s808 + $0x4] sm:$0xf]
        %v811 = vld [vmem:[%s808 + $0x8] sm:$0xf]
        %v812 = vld [vmem:[%s808 + $0xc] sm:$0xf]
        %v813 = vld [vmem:[%s808 + $0x10] sm:$0xf]
        %v814 = vld [vmem:[%s808 + $0x14] sm:$0xf]
        %v815 = vld [vmem:[%s808 + $0x18] sm:$0xf]
        %v816 = vld [vmem:[%s808 + $0x1c] sm:$0xf]
        %v817 = vld [vmem:[%s808 + $0x20] sm:$0xf]
        %v818 = vld [vmem:[%s808 + $0x24] sm:$0xf]
        %v819 = vld [vmem:[%s808 + $0x28] sm:$0xf]
        %v820 = vld [vmem:[%s808 + $0x2c] sm:$0xf]
        %v821 = vld [vmem:[%s808 + $0x30] sm:$0xf]
        %v822 = vld [vmem:[%s808 + $0x34] sm:$0xf]
        %v823 = vld [vmem:[%s808 + $0x38] sm:$0xf]
        %v824 = vld [vmem:[%s808 + $0x3c] sm:$0xf]
        %v833 = vunpack.c.l.b16 %v792
        %v834 = vunpack.c.l.b16 %v793
        %v835 = vunpack.c.l.b16 %v794
        %v836 = vunpack.c.l.b16 %v795
        %v837 = vunpack.c.l.b16 %v796
        %v838 = vunpack.c.l.b16 %v797
        %v839 = vunpack.c.l.b16 %v798
        %v840 = vunpack.c.l.b16 %v799
        %v841 = vpack.c.b16 %v834, %v833
        %v842 = vpack.c.b16 %v836, %v835
        %v843 = vpack.c.b16 %v838, %v837
        %v844 = vpack.c.b16 %v840, %v839
        %v865 = vunpack.c.l.b16 %v809
        %v866 = vunpack.c.l.b16 %v810
        %v867 = vunpack.c.l.b16 %v811
        %v868 = vunpack.c.l.b16 %v812
        %v869 = vunpack.c.l.b16 %v813
        %v870 = vunpack.c.l.b16 %v814
        %v871 = vunpack.c.l.b16 %v815
        %v872 = vunpack.c.l.b16 %v816
        %v873 = vunpack.c.l.b16 %v817
        %v874 = vunpack.c.l.b16 %v818
        %v875 = vunpack.c.l.b16 %v819
        %v876 = vunpack.c.l.b16 %v820
        %v877 = vunpack.c.l.b16 %v821
        %v878 = vunpack.c.l.b16 %v822
        %v879 = vunpack.c.l.b16 %v823
        %v880 = vunpack.c.l.b16 %v824
        %v881 = vpack.c.b16 %v866, %v865
        %v882 = vpack.c.b16 %v868, %v867
        %v883 = vpack.c.b16 %v870, %v869
        %v884 = vpack.c.b16 %v872, %v871
        %v885 = vpack.c.b16 %v874, %v873
        %v886 = vpack.c.b16 %v876, %v875
        %v887 = vpack.c.b16 %v878, %v877
        %v888 = vpack.c.b16 %v880, %v879
        %897 = vmatpush.bf16.msra.mxu0 %v888
        %898 = vmatpush.bf16.msra.mxu0 %v887
        %899 = vmatpush.bf16.msra.mxu0 %v886
        %900 = vmatpush.bf16.msra.mxu0 %v885
        %901 = vmatpush.bf16.msra.mxu0 %v884
        %902 = vmatpush.bf16.msra.mxu0 %v883
        %903 = vmatpush.bf16.msra.mxu0 %v882
        %904 = vmatpush.bf16.msra.mxu0 %v881
        %905 = vmatmul.bf16.gmra.mxu0 %v841
        %v906 = vpop.f32.mrf.mxu0
        %v907 = vadd.f32 0.0, %v906
        %v908 = vpop.f32.mrf.mxu0
        %v909 = vadd.f32 0.0, %v908
        %910 = vmatmul.bf16.gmra.mxu0 %v842
        %v911 = vpop.f32.mrf.mxu0
        %v912 = vadd.f32 0.0, %v911
        %v913 = vpop.f32.mrf.mxu0
        %v914 = vadd.f32 0.0, %v913
        %915 = vmatmul.bf16.gmra.mxu0 %v843
        %v916 = vpop.f32.mrf.mxu0
        %v917 = vadd.f32 0.0, %v916
        %v918 = vpop.f32.mrf.mxu0
        %v919 = vadd.f32 0.0, %v918
        %920 = vmatmul.bf16.gmra.mxu0 %v844
        %v921 = vpop.f32.mrf.mxu0
        %v922 = vadd.f32 0.0, %v921
        %v923 = vpop.f32.mrf.mxu0
        %v924 = vadd.f32 0.0, %v923
        %925 = vdwg.mxu0
        %v926 = vadd.f32 %v800, %v907
        %v927 = vadd.f32 %v801, %v909
        %v928 = vadd.f32 %v802, %v912
        %v929 = vadd.f32 %v803, %v914
        %v930 = vadd.f32 %v804, %v917
        %v931 = vadd.f32 %v805, %v919
        %v932 = vadd.f32 %v806, %v922
        %v933 = vadd.f32 %v807, %v924
        %934 = vst [vmem:[#allocation2] sm:$0xff] %v926
        %935 = vst [vmem:[#allocation2 + $0x8] sm:$0xff] %v927
        %936 = vst [vmem:[#allocation2 + $0x10] sm:$0xff] %v928
        %937 = vst [vmem:[#allocation2 + $0x18] sm:$0xff] %v929
        %938 = vst [vmem:[#allocation2 + $0x20] sm:$0xff] %v930
        %939 = vst [vmem:[#allocation2 + $0x28] sm:$0xff] %v931
        %940 = vst [vmem:[#allocation2 + $0x30] sm:$0xff] %v932
        %941 = vst [vmem:[#allocation2 + $0x38] sm:$0xff] %v933
        %s942 = scalar_lea.vmem %s206, 216
        %v943 = vld [vmem:[%s942] sm:$0xf]
        %v944 = vld [vmem:[%s942 + $0x8] sm:$0xf]
        %v945 = vld [vmem:[%s942 + $0x10] sm:$0xf]
        %v946 = vld [vmem:[%s942 + $0x18] sm:$0xf]
        %v947 = vld [vmem:[%s942 + $0x20] sm:$0xf]
        %v948 = vld [vmem:[%s942 + $0x28] sm:$0xf]
        %v949 = vld [vmem:[%s942 + $0x30] sm:$0xf]
        %v950 = vld [vmem:[%s942 + $0x38] sm:$0xf]
        %v951 = vld [vmem:[#allocation2] sm:$0xff]
        %v952 = vld [vmem:[#allocation2 + $0x8] sm:$0xff]
        %v953 = vld [vmem:[#allocation2 + $0x10] sm:$0xff]
        %v954 = vld [vmem:[#allocation2 + $0x18] sm:$0xff]
        %v955 = vld [vmem:[#allocation2 + $0x20] sm:$0xff]
        %v956 = vld [vmem:[#allocation2 + $0x28] sm:$0xff]
        %v957 = vld [vmem:[#allocation2 + $0x30] sm:$0xff]
        %v958 = vld [vmem:[#allocation2 + $0x38] sm:$0xff]
        %s959 = scalar_lea.vmem %s210, 256
        %v960 = vld [vmem:[%s959] sm:$0xf]
        %v961 = vld [vmem:[%s959 + $0x4] sm:$0xf]
        %v962 = vld [vmem:[%s959 + $0x8] sm:$0xf]
        %v963 = vld [vmem:[%s959 + $0xc] sm:$0xf]
        %v964 = vld [vmem:[%s959 + $0x10] sm:$0xf]
        %v965 = vld [vmem:[%s959 + $0x14] sm:$0xf]
        %v966 = vld [vmem:[%s959 + $0x18] sm:$0xf]
        %v967 = vld [vmem:[%s959 + $0x1c] sm:$0xf]
        %v968 = vld [vmem:[%s959 + $0x20] sm:$0xf]
        %v969 = vld [vmem:[%s959 + $0x24] sm:$0xf]
        %v970 = vld [vmem:[%s959 + $0x28] sm:$0xf]
        %v971 = vld [vmem:[%s959 + $0x2c] sm:$0xf]
        %v972 = vld [vmem:[%s959 + $0x30] sm:$0xf]
        %v973 = vld [vmem:[%s959 + $0x34] sm:$0xf]
        %v974 = vld [vmem:[%s959 + $0x38] sm:$0xf]
        %v975 = vld [vmem:[%s959 + $0x3c] sm:$0xf]
        %v984 = vunpack.c.l.b16 %v943
        %v985 = vunpack.c.l.b16 %v944
        %v986 = vunpack.c.l.b16 %v945
        %v987 = vunpack.c.l.b16 %v946
        %v988 = vunpack.c.l.b16 %v947
        %v989 = vunpack.c.l.b16 %v948
        %v990 = vunpack.c.l.b16 %v949
        %v991 = vunpack.c.l.b16 %v950
        %v992 = vpack.c.b16 %v985, %v984
        %v993 = vpack.c.b16 %v987, %v986
        %v994 = vpack.c.b16 %v989, %v988
        %v995 = vpack.c.b16 %v991, %v990
        %v1016 = vunpack.c.l.b16 %v960
        %v1017 = vunpack.c.l.b16 %v961
        %v1018 = vunpack.c.l.b16 %v962
        %v1019 = vunpack.c.l.b16 %v963
        %v1020 = vunpack.c.l.b16 %v964
        %v1021 = vunpack.c.l.b16 %v965
        %v1022 = vunpack.c.l.b16 %v966
        %v1023 = vunpack.c.l.b16 %v967
        %v1024 = vunpack.c.l.b16 %v968
        %v1025 = vunpack.c.l.b16 %v969
        %v1026 = vunpack.c.l.b16 %v970
        %v1027 = vunpack.c.l.b16 %v971
        %v1028 = vunpack.c.l.b16 %v972
        %v1029 = vunpack.c.l.b16 %v973
        %v1030 = vunpack.c.l.b16 %v974
        %v1031 = vunpack.c.l.b16 %v975
        %v1032 = vpack.c.b16 %v1017, %v1016
        %v1033 = vpack.c.b16 %v1019, %v1018
        %v1034 = vpack.c.b16 %v1021, %v1020
        %v1035 = vpack.c.b16 %v1023, %v1022
        %v1036 = vpack.c.b16 %v1025, %v1024
        %v1037 = vpack.c.b16 %v1027, %v1026
        %v1038 = vpack.c.b16 %v1029, %v1028
        %v1039 = vpack.c.b16 %v1031, %v1030
        %1048 = vmatpush.bf16.msra.mxu0 %v1039
        %1049 = vmatpush.bf16.msra.mxu0 %v1038
        %1050 = vmatpush.bf16.msra.mxu0 %v1037
        %1051 = vmatpush.bf16.msra.mxu0 %v1036
        %1052 = vmatpush.bf16.msra.mxu0 %v1035
        %1053 = vmatpush.bf16.msra.mxu0 %v1034
        %1054 = vmatpush.bf16.msra.mxu0 %v1033
        %1055 = vmatpush.bf16.msra.mxu0 %v1032
        %1056 = vmatmul.bf16.gmra.mxu0 %v992
        %v1057 = vpop.f32.mrf.mxu0
        %v1058 = vadd.f32 0.0, %v1057
        %v1059 = vpop.f32.mrf.mxu0
        %v1060 = vadd.f32 0.0, %v1059
        %1061 = vmatmul.bf16.gmra.mxu0 %v993
        %v1062 = vpop.f32.mrf.mxu0
        %v1063 = vadd.f32 0.0, %v1062
        %v1064 = vpop.f32.mrf.mxu0
        %v1065 = vadd.f32 0.0, %v1064
        %1066 = vmatmul.bf16.gmra.mxu0 %v994
        %v1067 = vpop.f32.mrf.mxu0
        %v1068 = vadd.f32 0.0, %v1067
        %v1069 = vpop.f32.mrf.mxu0
        %v1070 = vadd.f32 0.0, %v1069
        %1071 = vmatmul.bf16.gmra.mxu0 %v995
        %v1072 = vpop.f32.mrf.mxu0
        %v1073 = vadd.f32 0.0, %v1072
        %v1074 = vpop.f32.mrf.mxu0
        %v1075 = vadd.f32 0.0, %v1074
        %1076 = vdwg.mxu0
        %v1077 = vadd.f32 %v951, %v1058
        %v1078 = vadd.f32 %v952, %v1060
        %v1079 = vadd.f32 %v953, %v1063
        %v1080 = vadd.f32 %v954, %v1065
        %v1081 = vadd.f32 %v955, %v1068
        %v1082 = vadd.f32 %v956, %v1070
        %v1083 = vadd.f32 %v957, %v1073
        %v1084 = vadd.f32 %v958, %v1075
        %1085 = vst [vmem:[#allocation2] sm:$0xff] %v1077
        %1086 = vst [vmem:[#allocation2 + $0x8] sm:$0xff] %v1078
        %1087 = vst [vmem:[#allocation2 + $0x10] sm:$0xff] %v1079
        %1088 = vst [vmem:[#allocation2 + $0x18] sm:$0xff] %v1080
        %1089 = vst [vmem:[#allocation2 + $0x20] sm:$0xff] %v1081
        %1090 = vst [vmem:[#allocation2 + $0x28] sm:$0xff] %v1082
        %1091 = vst [vmem:[#allocation2 + $0x30] sm:$0xff] %v1083
        %1092 = vst [vmem:[#allocation2 + $0x38] sm:$0xff] %v1084
        %v1093 = vld [vmem:[%s791] sm:$0xf]
        %v1094 = vld [vmem:[%s791 + $0x4] sm:$0x1]
        %v1095 = vld [vmem:[%s791 + $0x8] sm:$0xf]
        %v1096 = vld [vmem:[%s791 + $0xc] sm:$0x1]
        %v1097 = vld [vmem:[%s791 + $0x10] sm:$0xf]
        %v1098 = vld [vmem:[%s791 + $0x14] sm:$0x1]
        %v1099 = vld [vmem:[%s791 + $0x18] sm:$0xf]
        %v1100 = vld [vmem:[%s791 + $0x1c] sm:$0x1]
        %v1101 = vld [vmem:[%s791 + $0x20] sm:$0xf]
        %v1102 = vld [vmem:[%s791 + $0x24] sm:$0x1]
        %v1103 = vld [vmem:[%s791 + $0x28] sm:$0xf]
        %v1104 = vld [vmem:[%s791 + $0x2c] sm:$0x1]
        %v1105 = vld [vmem:[%s791 + $0x30] sm:$0xf]
        %v1106 = vld [vmem:[%s791 + $0x34] sm:$0x1]
        %v1107 = vld [vmem:[%s791 + $0x38] sm:$0xf]
        %v1108 = vld [vmem:[%s791 + $0x3c] sm:$0x1]
        %v1109 = vld [vmem:[#allocation2] sm:$0xff]
        %v1110 = vld [vmem:[#allocation2 + $0x8] sm:$0xff]
        %v1111 = vld [vmem:[#allocation2 + $0x10] sm:$0xff]
        %v1112 = vld [vmem:[#allocation2 + $0x18] sm:$0xff]
        %v1113 = vld [vmem:[#allocation2 + $0x20] sm:$0xff]
        %v1114 = vld [vmem:[#allocation2 + $0x28] sm:$0xff]
        %v1115 = vld [vmem:[#allocation2 + $0x30] sm:$0xff]
        %v1116 = vld [vmem:[#allocation2 + $0x38] sm:$0xff]
        %v1118 = vshrl.u32 %v1093, 16
        %v1120 = vrot.slane %v1118, 4
        %v1121 = vshll.u32 %v1093, 16
        %v1123 = vrot.slane %v1121, 5
        %v1124 = vor.u32 %v1120, %v1123
        %v1125 = vrot.slane %v1124, 4
        %v1127 = vshll.u32 %v1094, 16
        %v1129 = vrot.slane %v1127, 5
        %v1130 = vsel %vm552, %v1125, %v1129
        %v1132 = vshrl.u32 %v1095, 16
        %v1134 = vrot.slane %v1132, 4
        %v1135 = vshll.u32 %v1095, 16
        %v1137 = vrot.slane %v1135, 5
        %v1138 = vor.u32 %v1134, %v1137
        %v1139 = vrot.slane %v1138, 4
        %v1141 = vshll.u32 %v1096, 16
        %v1143 = vrot.slane %v1141, 5
        %v1144 = vsel %vm552, %v1139, %v1143
        %v1146 = vshrl.u32 %v1097, 16
        %v1148 = vrot.slane %v1146, 4
        %v1149 = vshll.u32 %v1097, 16
        %v1151 = vrot.slane %v1149, 5
        %v1152 = vor.u32 %v1148, %v1151
        %v1153 = vrot.slane %v1152, 4
        %v1155 = vshll.u32 %v1098, 16
        %v1157 = vrot.slane %v1155, 5
        %v1158 = vsel %vm552, %v1153, %v1157
        %v1160 = vshrl.u32 %v1099, 16
        %v1162 = vrot.slane %v1160, 4
        %v1163 = vshll.u32 %v1099, 16
        %v1165 = vrot.slane %v1163, 5
        %v1166 = vor.u32 %v1162, %v1165
        %v1167 = vrot.slane %v1166, 4
        %v1169 = vshll.u32 %v1100, 16
        %v1171 = vrot.slane %v1169, 5
        %v1172 = vsel %vm552, %v1167, %v1171
        %v1174 = vshrl.u32 %v1101, 16
        %v1176 = vrot.slane %v1174, 4
        %v1177 = vshll.u32 %v1101, 16
        %v1179 = vrot.slane %v1177, 5
        %v1180 = vor.u32 %v1176, %v1179
        %v1181 = vrot.slane %v1180, 4
        %v1183 = vshll.u32 %v1102, 16
        %v1185 = vrot.slane %v1183, 5
        %v1186 = vsel %vm552, %v1181, %v1185
        %v1188 = vshrl.u32 %v1103, 16
        %v1190 = vrot.slane %v1188, 4
        %v1191 = vshll.u32 %v1103, 16
        %v1193 = vrot.slane %v1191, 5
        %v1194 = vor.u32 %v1190, %v1193
        %v1195 = vrot.slane %v1194, 4
        %v1197 = vshll.u32 %v1104, 16
        %v1199 = vrot.slane %v1197, 5
        %v1200 = vsel %vm552, %v1195, %v1199
        %v1202 = vshrl.u32 %v1105, 16
        %v1204 = vrot.slane %v1202, 4
        %v1205 = vshll.u32 %v1105, 16
        %v1207 = vrot.slane %v1205, 5
        %v1208 = vor.u32 %v1204, %v1207
        %v1209 = vrot.slane %v1208, 4
        %v1211 = vshll.u32 %v1106, 16
        %v1213 = vrot.slane %v1211, 5
        %v1214 = vsel %vm552, %v1209, %v1213
        %v1216 = vshrl.u32 %v1107, 16
        %v1218 = vrot.slane %v1216, 4
        %v1219 = vshll.u32 %v1107, 16
        %v1221 = vrot.slane %v1219, 5
        %v1222 = vor.u32 %v1218, %v1221
        %v1223 = vrot.slane %v1222, 4
        %v1225 = vshll.u32 %v1108, 16
        %v1227 = vrot.slane %v1225, 5
        %v1228 = vsel %vm552, %v1223, %v1227
        %s1229 = scalar_lea.vmem %s210, 320
        %v1230 = vld [vmem:[%s1229] sm:$0xf]
        %v1231 = vld [vmem:[%s1229 + $0x4] sm:$0xf]
        %v1232 = vld [vmem:[%s1229 + $0x8] sm:$0xf]
        %v1233 = vld [vmem:[%s1229 + $0xc] sm:$0xf]
        %v1234 = vld [vmem:[%s1229 + $0x10] sm:$0xf]
        %v1235 = vld [vmem:[%s1229 + $0x14] sm:$0xf]
        %v1236 = vld [vmem:[%s1229 + $0x18] sm:$0xf]
        %v1237 = vld [vmem:[%s1229 + $0x1c] sm:$0xf]
        %v1238 = vld [vmem:[%s1229 + $0x20] sm:$0xf]
        %v1239 = vld [vmem:[%s1229 + $0x24] sm:$0xf]
        %v1240 = vld [vmem:[%s1229 + $0x28] sm:$0xf]
        %v1241 = vld [vmem:[%s1229 + $0x2c] sm:$0xf]
        %v1242 = vld [vmem:[%s1229 + $0x30] sm:$0xf]
        %v1243 = vld [vmem:[%s1229 + $0x34] sm:$0xf]
        %v1244 = vld [vmem:[%s1229 + $0x38] sm:$0xf]
        %v1245 = vld [vmem:[%s1229 + $0x3c] sm:$0xf]
        %v1246 = vunpack.c.l.b16 %v1130
        %v1247 = vunpack.c.l.b16 %v1144
        %v1248 = vunpack.c.l.b16 %v1158
        %v1249 = vunpack.c.l.b16 %v1172
        %v1250 = vunpack.c.l.b16 %v1186
        %v1251 = vunpack.c.l.b16 %v1200
        %v1252 = vunpack.c.l.b16 %v1214
        %v1253 = vunpack.c.l.b16 %v1228
        %v1254 = vpack.c.b16 %v1247, %v1246
        %v1255 = vpack.c.b16 %v1249, %v1248
        %v1256 = vpack.c.b16 %v1251, %v1250
        %v1257 = vpack.c.b16 %v1253, %v1252
        %v1278 = vunpack.c.l.b16 %v1230
        %v1279 = vunpack.c.l.b16 %v1231
        %v1280 = vunpack.c.l.b16 %v1232
        %v1281 = vunpack.c.l.b16 %v1233
        %v1282 = vunpack.c.l.b16 %v1234
        %v1283 = vunpack.c.l.b16 %v1235
        %v1284 = vunpack.c.l.b16 %v1236
        %v1285 = vunpack.c.l.b16 %v1237
        %v1286 = vunpack.c.l.b16 %v1238
        %v1287 = vunpack.c.l.b16 %v1239
        %v1288 = vunpack.c.l.b16 %v1240
        %v1289 = vunpack.c.l.b16 %v1241
        %v1290 = vunpack.c.l.b16 %v1242
        %v1291 = vunpack.c.l.b16 %v1243
        %v1292 = vunpack.c.l.b16 %v1244
        %v1293 = vunpack.c.l.b16 %v1245
        %v1294 = vpack.c.b16 %v1279, %v1278
        %v1295 = vpack.c.b16 %v1281, %v1280
        %v1296 = vpack.c.b16 %v1283, %v1282
        %v1297 = vpack.c.b16 %v1285, %v1284
        %v1298 = vpack.c.b16 %v1287, %v1286
        %v1299 = vpack.c.b16 %v1289, %v1288
        %v1300 = vpack.c.b16 %v1291, %v1290
        %v1301 = vpack.c.b16 %v1293, %v1292
        %1310 = vmatpush.bf16.msra.mxu0 %v1301
        %1311 = vmatpush.bf16.msra.mxu0 %v1300
        %1312 = vmatpush.bf16.msra.mxu0 %v1299
        %1313 = vmatpush.bf16.msra.mxu0 %v1298
        %1314 = vmatpush.bf16.msra.mxu0 %v1297
        %1315 = vmatpush.bf16.msra.mxu0 %v1296
        %1316 = vmatpush.bf16.msra.mxu0 %v1295
        %1317 = vmatpush.bf16.msra.mxu0 %v1294
        %1318 = vmatmul.bf16.gmra.mxu0 %v1254
        %v1319 = vpop.f32.mrf.mxu0
        %v1320 = vadd.f32 0.0, %v1319
        %v1321 = vpop.f32.mrf.mxu0
        %v1322 = vadd.f32 0.0, %v1321
        %1323 = vmatmul.bf16.gmra.mxu0 %v1255
        %v1324 = vpop.f32.mrf.mxu0
        %v1325 = vadd.f32 0.0, %v1324
        %v1326 = vpop.f32.mrf.mxu0
        %v1327 = vadd.f32 0.0, %v1326
        %1328 = vmatmul.bf16.gmra.mxu0 %v1256
        %v1329 = vpop.f32.mrf.mxu0
        %v1330 = vadd.f32 0.0, %v1329
        %v1331 = vpop.f32.mrf.mxu0
        %v1332 = vadd.f32 0.0, %v1331
        %1333 = vmatmul.bf16.gmra.mxu0 %v1257
        %v1334 = vpop.f32.mrf.mxu0
        %v1335 = vadd.f32 0.0, %v1334
        %v1336 = vpop.f32.mrf.mxu0
        %v1337 = vadd.f32 0.0, %v1336
        %1338 = vdwg.mxu0
        %v1339 = vadd.f32 %v1109, %v1320
        %v1340 = vadd.f32 %v1110, %v1322
        %v1341 = vadd.f32 %v1111, %v1325
        %v1342 = vadd.f32 %v1112, %v1327
        %v1343 = vadd.f32 %v1113, %v1330
        %v1344 = vadd.f32 %v1114, %v1332
        %v1345 = vadd.f32 %v1115, %v1335
        %v1346 = vadd.f32 %v1116, %v1337
        %1347 = vst [vmem:[#allocation2] sm:$0xff] %v1339
        %1348 = vst [vmem:[#allocation2 + $0x8] sm:$0xff] %v1340
        %1349 = vst [vmem:[#allocation2 + $0x10] sm:$0xff] %v1341
        %1350 = vst [vmem:[#allocation2 + $0x18] sm:$0xff] %v1342
        %1351 = vst [vmem:[#allocation2 + $0x20] sm:$0xff] %v1343
        %1352 = vst [vmem:[#allocation2 + $0x28] sm:$0xff] %v1344
        %1353 = vst [vmem:[#allocation2 + $0x30] sm:$0xff] %v1345
        %1354 = vst [vmem:[#allocation2 + $0x38] sm:$0xff] %v1346
        %s1355 = scalar_lea.vmem %s206, 8
        %v1356 = vld [vmem:[%s1355] sm:$0xf]
        %v1357 = vld [vmem:[%s1355 + $0x8] sm:$0xf]
        %v1358 = vld [vmem:[%s1355 + $0x10] sm:$0xf]
        %v1359 = vld [vmem:[%s1355 + $0x18] sm:$0xf]
        %v1360 = vld [vmem:[%s1355 + $0x20] sm:$0xf]
        %v1361 = vld [vmem:[%s1355 + $0x28] sm:$0xf]
        %v1362 = vld [vmem:[%s1355 + $0x30] sm:$0xf]
        %v1363 = vld [vmem:[%s1355 + $0x38] sm:$0xf]
        %v1364 = vld [vmem:[#allocation2] sm:$0xff]
        %v1365 = vld [vmem:[#allocation2 + $0x8] sm:$0xff]
        %v1366 = vld [vmem:[#allocation2 + $0x10] sm:$0xff]
        %v1367 = vld [vmem:[#allocation2 + $0x18] sm:$0xff]
        %v1368 = vld [vmem:[#allocation2 + $0x20] sm:$0xff]
        %v1369 = vld [vmem:[#allocation2 + $0x28] sm:$0xff]
        %v1370 = vld [vmem:[#allocation2 + $0x30] sm:$0xff]
        %v1371 = vld [vmem:[#allocation2 + $0x38] sm:$0xff]
        %s1372 = scalar_lea.vmem %s210, 384
        %v1373 = vld [vmem:[%s1372] sm:$0xf]
        %v1374 = vld [vmem:[%s1372 + $0x4] sm:$0xf]
        %v1375 = vld [vmem:[%s1372 + $0x8] sm:$0xf]
        %v1376 = vld [vmem:[%s1372 + $0xc] sm:$0xf]
        %v1377 = vld [vmem:[%s1372 + $0x10] sm:$0xf]
        %v1378 = vld [vmem:[%s1372 + $0x14] sm:$0xf]
        %v1379 = vld [vmem:[%s1372 + $0x18] sm:$0xf]
        %v1380 = vld [vmem:[%s1372 + $0x1c] sm:$0xf]
        %v1381 = vld [vmem:[%s1372 + $0x20] sm:$0xf]
        %v1382 = vld [vmem:[%s1372 + $0x24] sm:$0xf]
        %v1383 = vld [vmem:[%s1372 + $0x28] sm:$0xf]
        %v1384 = vld [vmem:[%s1372 + $0x2c] sm:$0xf]
        %v1385 = vld [vmem:[%s1372 + $0x30] sm:$0xf]
        %v1386 = vld [vmem:[%s1372 + $0x34] sm:$0xf]
        %v1387 = vld [vmem:[%s1372 + $0x38] sm:$0xf]
        %v1388 = vld [vmem:[%s1372 + $0x3c] sm:$0xf]
        %v1397 = vunpack.c.l.b16 %v1356
        %v1398 = vunpack.c.l.b16 %v1357
        %v1399 = vunpack.c.l.b16 %v1358
        %v1400 = vunpack.c.l.b16 %v1359
        %v1401 = vunpack.c.l.b16 %v1360
        %v1402 = vunpack.c.l.b16 %v1361
        %v1403 = vunpack.c.l.b16 %v1362
        %v1404 = vunpack.c.l.b16 %v1363
        %v1405 = vpack.c.b16 %v1398, %v1397
        %v1406 = vpack.c.b16 %v1400, %v1399
        %v1407 = vpack.c.b16 %v1402, %v1401
        %v1408 = vpack.c.b16 %v1404, %v1403
        %v1429 = vunpack.c.l.b16 %v1373
        %v1430 = vunpack.c.l.b16 %v1374
        %v1431 = vunpack.c.l.b16 %v1375
        %v1432 = vunpack.c.l.b16 %v1376
        %v1433 = vunpack.c.l.b16 %v1377
        %v1434 = vunpack.c.l.b16 %v1378
        %v1435 = vunpack.c.l.b16 %v1379
        %v1436 = vunpack.c.l.b16 %v1380
        %v1437 = vunpack.c.l.b16 %v1381
        %v1438 = vunpack.c.l.b16 %v1382
        %v1439 = vunpack.c.l.b16 %v1383
        %v1440 = vunpack.c.l.b16 %v1384
        %v1441 = vunpack.c.l.b16 %v1385
        %v1442 = vunpack.c.l.b16 %v1386
        %v1443 = vunpack.c.l.b16 %v1387
        %v1444 = vunpack.c.l.b16 %v1388
        %v1445 = vpack.c.b16 %v1430, %v1429
        %v1446 = vpack.c.b16 %v1432, %v1431
        %v1447 = vpack.c.b16 %v1434, %v1433
        %v1448 = vpack.c.b16 %v1436, %v1435
        %v1449 = vpack.c.b16 %v1438, %v1437
        %v1450 = vpack.c.b16 %v1440, %v1439
        %v1451 = vpack.c.b16 %v1442, %v1441
        %v1452 = vpack.c.b16 %v1444, %v1443
        %1461 = vmatpush.bf16.msra.mxu0 %v1452
        %1462 = vmatpush.bf16.msra.mxu0 %v1451
        %1463 = vmatpush.bf16.msra.mxu0 %v1450
        %1464 = vmatpush.bf16.msra.mxu0 %v1449
        %1465 = vmatpush.bf16.msra.mxu0 %v1448
        %1466 = vmatpush.bf16.msra.mxu0 %v1447
        %1467 = vmatpush.bf16.msra.mxu0 %v1446
        %1468 = vmatpush.bf16.msra.mxu0 %v1445
        %1469 = vmatmul.bf16.gmra.mxu0 %v1405
        %v1470 = vpop.f32.mrf.mxu0
        %v1471 = vadd.f32 0.0, %v1470
        %v1472 = vpop.f32.mrf.mxu0
        %v1473 = vadd.f32 0.0, %v1472
        %1474 = vmatmul.bf16.gmra.mxu0 %v1406
        %v1475 = vpop.f32.mrf.mxu0
        %v1476 = vadd.f32 0.0, %v1475
        %v1477 = vpop.f32.mrf.mxu0
        %v1478 = vadd.f32 0.0, %v1477
        %1479 = vmatmul.bf16.gmra.mxu0 %v1407
        %v1480 = vpop.f32.mrf.mxu0
        %v1481 = vadd.f32 0.0, %v1480
        %v1482 = vpop.f32.mrf.mxu0
        %v1483 = vadd.f32 0.0, %v1482
        %1484 = vmatmul.bf16.gmra.mxu0 %v1408
        %v1485 = vpop.f32.mrf.mxu0
        %v1486 = vadd.f32 0.0, %v1485
        %v1487 = vpop.f32.mrf.mxu0
        %v1488 = vadd.f32 0.0, %v1487
        %1489 = vdwg.mxu0
        %v1490 = vadd.f32 %v1364, %v1471
        %v1491 = vadd.f32 %v1365, %v1473
        %v1492 = vadd.f32 %v1366, %v1476
        %v1493 = vadd.f32 %v1367, %v1478
        %v1494 = vadd.f32 %v1368, %v1481
        %v1495 = vadd.f32 %v1369, %v1483
        %v1496 = vadd.f32 %v1370, %v1486
        %v1497 = vadd.f32 %v1371, %v1488
        %1498 = vst [vmem:[#allocation2] sm:$0xff] %v1490
        %1499 = vst [vmem:[#allocation2 + $0x8] sm:$0xff] %v1491
        %1500 = vst [vmem:[#allocation2 + $0x10] sm:$0xff] %v1492
        %1501 = vst [vmem:[#allocation2 + $0x18] sm:$0xff] %v1493
        %1502 = vst [vmem:[#allocation2 + $0x20] sm:$0xff] %v1494
        %1503 = vst [vmem:[#allocation2 + $0x28] sm:$0xff] %v1495
        %1504 = vst [vmem:[#allocation2 + $0x30] sm:$0xff] %v1496
        %1505 = vst [vmem:[#allocation2 + $0x38] sm:$0xff] %v1497
        %s1506 = scalar_lea.vmem %s206, 80
        %v1507 = vld [vmem:[%s1506] sm:$0xf]
        %v1508 = vld [vmem:[%s1506 + $0x8] sm:$0xf]
        %v1509 = vld [vmem:[%s1506 + $0x10] sm:$0xf]
        %v1510 = vld [vmem:[%s1506 + $0x18] sm:$0xf]
        %v1511 = vld [vmem:[%s1506 + $0x20] sm:$0xf]
        %v1512 = vld [vmem:[%s1506 + $0x28] sm:$0xf]
        %v1513 = vld [vmem:[%s1506 + $0x30] sm:$0xf]
        %v1514 = vld [vmem:[%s1506 + $0x38] sm:$0xf]
        %v1515 = vld [vmem:[#allocation2] sm:$0xff]
        %v1516 = vld [vmem:[#allocation2 + $0x8] sm:$0xff]
        %v1517 = vld [vmem:[#allocation2 + $0x10] sm:$0xff]
        %v1518 = vld [vmem:[#allocation2 + $0x18] sm:$0xff]
        %v1519 = vld [vmem:[#allocation2 + $0x20] sm:$0xff]
        %v1520 = vld [vmem:[#allocation2 + $0x28] sm:$0xff]
        %v1521 = vld [vmem:[#allocation2 + $0x30] sm:$0xff]
        %v1522 = vld [vmem:[#allocation2 + $0x38] sm:$0xff]
        %s1523 = scalar_lea.vmem %s210, 448
        %v1524 = vld [vmem:[%s1523] sm:$0xf]
        %v1525 = vld [vmem:[%s1523 + $0x4] sm:$0xf]
        %v1526 = vld [vmem:[%s1523 + $0x8] sm:$0xf]
        %v1527 = vld [vmem:[%s1523 + $0xc] sm:$0xf]
        %v1528 = vld [vmem:[%s1523 + $0x10] sm:$0xf]
        %v1529 = vld [vmem:[%s1523 + $0x14] sm:$0xf]
        %v1530 = vld [vmem:[%s1523 + $0x18] sm:$0xf]
        %v1531 = vld [vmem:[%s1523 + $0x1c] sm:$0xf]
        %v1532 = vld [vmem:[%s1523 + $0x20] sm:$0xf]
        %v1533 = vld [vmem:[%s1523 + $0x24] sm:$0xf]
        %v1534 = vld [vmem:[%s1523 + $0x28] sm:$0xf]
        %v1535 = vld [vmem:[%s1523 + $0x2c] sm:$0xf]
        %v1536 = vld [vmem:[%s1523 + $0x30] sm:$0xf]
        %v1537 = vld [vmem:[%s1523 + $0x34] sm:$0xf]
        %v1538 = vld [vmem:[%s1523 + $0x38] sm:$0xf]
        %v1539 = vld [vmem:[%s1523 + $0x3c] sm:$0xf]
        %v1548 = vunpack.c.l.b16 %v1507
        %v1549 = vunpack.c.l.b16 %v1508
        %v1550 = vunpack.c.l.b16 %v1509
        %v1551 = vunpack.c.l.b16 %v1510
        %v1552 = vunpack.c.l.b16 %v1511
        %v1553 = vunpack.c.l.b16 %v1512
        %v1554 = vunpack.c.l.b16 %v1513
        %v1555 = vunpack.c.l.b16 %v1514
        %v1556 = vpack.c.b16 %v1549, %v1548
        %v1557 = vpack.c.b16 %v1551, %v1550
        %v1558 = vpack.c.b16 %v1553, %v1552
        %v1559 = vpack.c.b16 %v1555, %v1554
        %v1580 = vunpack.c.l.b16 %v1524
        %v1581 = vunpack.c.l.b16 %v1525
        %v1582 = vunpack.c.l.b16 %v1526
        %v1583 = vunpack.c.l.b16 %v1527
        %v1584 = vunpack.c.l.b16 %v1528
        %v1585 = vunpack.c.l.b16 %v1529
        %v1586 = vunpack.c.l.b16 %v1530
        %v1587 = vunpack.c.l.b16 %v1531
        %v1588 = vunpack.c.l.b16 %v1532
        %v1589 = vunpack.c.l.b16 %v1533
        %v1590 = vunpack.c.l.b16 %v1534
        %v1591 = vunpack.c.l.b16 %v1535
        %v1592 = vunpack.c.l.b16 %v1536
        %v1593 = vunpack.c.l.b16 %v1537
        %v1594 = vunpack.c.l.b16 %v1538
        %v1595 = vunpack.c.l.b16 %v1539
        %v1596 = vpack.c.b16 %v1581, %v1580
        %v1597 = vpack.c.b16 %v1583, %v1582
        %v1598 = vpack.c.b16 %v1585, %v1584
        %v1599 = vpack.c.b16 %v1587, %v1586
        %v1600 = vpack.c.b16 %v1589, %v1588
        %v1601 = vpack.c.b16 %v1591, %v1590
        %v1602 = vpack.c.b16 %v1593, %v1592
        %v1603 = vpack.c.b16 %v1595, %v1594
        %1612 = vmatpush.bf16.msra.mxu0 %v1603
        %1613 = vmatpush.bf16.msra.mxu0 %v1602
        %1614 = vmatpush.bf16.msra.mxu0 %v1601
        %1615 = vmatpush.bf16.msra.mxu0 %v1600
        %1616 = vmatpush.bf16.msra.mxu0 %v1599
        %1617 = vmatpush.bf16.msra.mxu0 %v1598
        %1618 = vmatpush.bf16.msra.mxu0 %v1597
        %1619 = vmatpush.bf16.msra.mxu0 %v1596
        %1620 = vmatmul.bf16.gmra.mxu0 %v1556
        %v1621 = vpop.f32.mrf.mxu0
        %v1622 = vadd.f32 0.0, %v1621
        %v1623 = vpop.f32.mrf.mxu0
        %v1624 = vadd.f32 0.0, %v1623
        %1625 = vmatmul.bf16.gmra.mxu0 %v1557
        %v1626 = vpop.f32.mrf.mxu0
        %v1627 = vadd.f32 0.0, %v1626
        %v1628 = vpop.f32.mrf.mxu0
        %v1629 = vadd.f32 0.0, %v1628
        %1630 = vmatmul.bf16.gmra.mxu0 %v1558
        %v1631 = vpop.f32.mrf.mxu0
        %v1632 = vadd.f32 0.0, %v1631
        %v1633 = vpop.f32.mrf.mxu0
        %v1634 = vadd.f32 0.0, %v1633
        %1635 = vmatmul.bf16.gmra.mxu0 %v1559
        %v1636 = vpop.f32.mrf.mxu0
        %v1637 = vadd.f32 0.0, %v1636
        %v1638 = vpop.f32.mrf.mxu0
        %v1639 = vadd.f32 0.0, %v1638
        %1640 = vdwg.mxu0
        %v1641 = vadd.f32 %v1515, %v1622
        %v1642 = vadd.f32 %v1516, %v1624
        %v1643 = vadd.f32 %v1517, %v1627
        %v1644 = vadd.f32 %v1518, %v1629
        %v1645 = vadd.f32 %v1519, %v1632
        %v1646 = vadd.f32 %v1520, %v1634
        %v1647 = vadd.f32 %v1521, %v1637
        %v1648 = vadd.f32 %v1522, %v1639
        %1649 = vst [vmem:[#allocation2] sm:$0xff] %v1641
        %1650 = vst [vmem:[#allocation2 + $0x8] sm:$0xff] %v1642
        %1651 = vst [vmem:[#allocation2 + $0x10] sm:$0xff] %v1643
        %1652 = vst [vmem:[#allocation2 + $0x18] sm:$0xff] %v1644
        %1653 = vst [vmem:[#allocation2 + $0x20] sm:$0xff] %v1645
        %1654 = vst [vmem:[#allocation2 + $0x28] sm:$0xff] %v1646
        %1655 = vst [vmem:[#allocation2 + $0x30] sm:$0xff] %v1647
        %1656 = vst [vmem:[#allocation2 + $0x38] sm:$0xff] %v1648
        %v1657 = vld [vmem:[%s1355] sm:$0xf]
        %v1658 = vld [vmem:[%s1355 + $0x4] sm:$0x1]
        %v1659 = vld [vmem:[%s1355 + $0x8] sm:$0xf]
        %v1660 = vld [vmem:[%s1355 + $0xc] sm:$0x1]
        %v1661 = vld [vmem:[%s1355 + $0x10] sm:$0xf]
        %v1662 = vld [vmem:[%s1355 + $0x14] sm:$0x1]
        %v1663 = vld [vmem:[%s1355 + $0x18] sm:$0xf]
        %v1664 = vld [vmem:[%s1355 + $0x1c] sm:$0x1]
        %v1665 = vld [vmem:[%s1355 + $0x20] sm:$0xf]
        %v1666 = vld [vmem:[%s1355 + $0x24] sm:$0x1]
        %v1667 = vld [vmem:[%s1355 + $0x28] sm:$0xf]
        %v1668 = vld [vmem:[%s1355 + $0x2c] sm:$0x1]
        %v1669 = vld [vmem:[%s1355 + $0x30] sm:$0xf]
        %v1670 = vld [vmem:[%s1355 + $0x34] sm:$0x1]
        %v1671 = vld [vmem:[%s1355 + $0x38] sm:$0xf]
        %v1672 = vld [vmem:[%s1355 + $0x3c] sm:$0x1]
        %v1673 = vld [vmem:[#allocation2] sm:$0xff]
        %v1674 = vld [vmem:[#allocation2 + $0x8] sm:$0xff]
        %v1675 = vld [vmem:[#allocation2 + $0x10] sm:$0xff]
        %v1676 = vld [vmem:[#allocation2 + $0x18] sm:$0xff]
        %v1677 = vld [vmem:[#allocation2 + $0x20] sm:$0xff]
        %v1678 = vld [vmem:[#allocation2 + $0x28] sm:$0xff]
        %v1679 = vld [vmem:[#allocation2 + $0x30] sm:$0xff]
        %v1680 = vld [vmem:[#allocation2 + $0x38] sm:$0xff]
        %v1682 = vshrl.u32 %v1657, 16
        %v1684 = vrot.slane %v1682, 4
        %v1685 = vshll.u32 %v1657, 16
        %v1687 = vrot.slane %v1685, 5
        %v1688 = vor.u32 %v1684, %v1687
        %v1689 = vrot.slane %v1688, 4
        %v1691 = vshll.u32 %v1658, 16
        %v1693 = vrot.slane %v1691, 5
        %v1694 = vsel %vm552, %v1689, %v1693
        %v1696 = vshrl.u32 %v1659, 16
        %v1698 = vrot.slane %v1696, 4
        %v1699 = vshll.u32 %v1659, 16
        %v1701 = vrot.slane %v1699, 5
        %v1702 = vor.u32 %v1698, %v1701
        %v1703 = vrot.slane %v1702, 4
        %v1705 = vshll.u32 %v1660, 16
        %v1707 = vrot.slane %v1705, 5
        %v1708 = vsel %vm552, %v1703, %v1707
        %v1710 = vshrl.u32 %v1661, 16
        %v1712 = vrot.slane %v1710, 4
        %v1713 = vshll.u32 %v1661, 16
        %v1715 = vrot.slane %v1713, 5
        %v1716 = vor.u32 %v1712, %v1715
        %v1717 = vrot.slane %v1716, 4
        %v1719 = vshll.u32 %v1662, 16
        %v1721 = vrot.slane %v1719, 5
        %v1722 = vsel %vm552, %v1717, %v1721
        %v1724 = vshrl.u32 %v1663, 16
        %v1726 = vrot.slane %v1724, 4
        %v1727 = vshll.u32 %v1663, 16
        %v1729 = vrot.slane %v1727, 5
        %v1730 = vor.u32 %v1726, %v1729
        %v1731 = vrot.slane %v1730, 4
        %v1733 = vshll.u32 %v1664, 16
        %v1735 = vrot.slane %v1733, 5
        %v1736 = vsel %vm552, %v1731, %v1735
        %v1738 = vshrl.u32 %v1665, 16
        %v1740 = vrot.slane %v1738, 4
        %v1741 = vshll.u32 %v1665, 16
        %v1743 = vrot.slane %v1741, 5
        %v1744 = vor.u32 %v1740, %v1743
        %v1745 = vrot.slane %v1744, 4
        %v1747 = vshll.u32 %v1666, 16
        %v1749 = vrot.slane %v1747, 5
        %v1750 = vsel %vm552, %v1745, %v1749
        %v1752 = vshrl.u32 %v1667, 16
        %v1754 = vrot.slane %v1752, 4
        %v1755 = vshll.u32 %v1667, 16
        %v1757 = vrot.slane %v1755, 5
        %v1758 = vor.u32 %v1754, %v1757
        %v1759 = vrot.slane %v1758, 4
        %v1761 = vshll.u32 %v1668, 16
        %v1763 = vrot.slane %v1761, 5
        %v1764 = vsel %vm552, %v1759, %v1763
        %v1766 = vshrl.u32 %v1669, 16
        %v1768 = vrot.slane %v1766, 4
        %v1769 = vshll.u32 %v1669, 16
        %v1771 = vrot.slane %v1769, 5
        %v1772 = vor.u32 %v1768, %v1771
        %v1773 = vrot.slane %v1772, 4
        %v1775 = vshll.u32 %v1670, 16
        %v1777 = vrot.slane %v1775, 5
        %v1778 = vsel %vm552, %v1773, %v1777
        %v1780 = vshrl.u32 %v1671, 16
        %v1782 = vrot.slane %v1780, 4
        %v1783 = vshll.u32 %v1671, 16
        %v1785 = vrot.slane %v1783, 5
        %v1786 = vor.u32 %v1782, %v1785
        %v1787 = vrot.slane %v1786, 4
        %v1789 = vshll.u32 %v1672, 16
        %v1791 = vrot.slane %v1789, 5
        %v1792 = vsel %vm552, %v1787, %v1791
        %s1793 = scalar_lea.vmem %s210, 512
        %v1794 = vld [vmem:[%s1793] sm:$0xf]
        %v1795 = vld [vmem:[%s1793 + $0x4] sm:$0xf]
        %v1796 = vld [vmem:[%s1793 + $0x8] sm:$0xf]
        %v1797 = vld [vmem:[%s1793 + $0xc] sm:$0xf]
        %v1798 = vld [vmem:[%s1793 + $0x10] sm:$0xf]
        %v1799 = vld [vmem:[%s1793 + $0x14] sm:$0xf]
        %v1800 = vld [vmem:[%s1793 + $0x18] sm:$0xf]
        %v1801 = vld [vmem:[%s1793 + $0x1c] sm:$0xf]
        %v1802 = vld [vmem:[%s1793 + $0x20] sm:$0xf]
        %v1803 = vld [vmem:[%s1793 + $0x24] sm:$0xf]
        %v1804 = vld [vmem:[%s1793 + $0x28] sm:$0xf]
        %v1805 = vld [vmem:[%s1793 + $0x2c] sm:$0xf]
        %v1806 = vld [vmem:[%s1793 + $0x30] sm:$0xf]
        %v1807 = vld [vmem:[%s1793 + $0x34] sm:$0xf]
        %v1808 = vld [vmem:[%s1793 + $0x38] sm:$0xf]
        %v1809 = vld [vmem:[%s1793 + $0x3c] sm:$0xf]
        %v1810 = vunpack.c.l.b16 %v1694
        %v1811 = vunpack.c.l.b16 %v1708
        %v1812 = vunpack.c.l.b16 %v1722
        %v1813 = vunpack.c.l.b16 %v1736
        %v1814 = vunpack.c.l.b16 %v1750
        %v1815 = vunpack.c.l.b16 %v1764
        %v1816 = vunpack.c.l.b16 %v1778
        %v1817 = vunpack.c.l.b16 %v1792
        %v1818 = vpack.c.b16 %v1811, %v1810
        %v1819 = vpack.c.b16 %v1813, %v1812
        %v1820 = vpack.c.b16 %v1815, %v1814
        %v1821 = vpack.c.b16 %v1817, %v1816
        %v1842 = vunpack.c.l.b16 %v1794
        %v1843 = vunpack.c.l.b16 %v1795
        %v1844 = vunpack.c.l.b16 %v1796
        %v1845 = vunpack.c.l.b16 %v1797
        %v1846 = vunpack.c.l.b16 %v1798
        %v1847 = vunpack.c.l.b16 %v1799
        %v1848 = vunpack.c.l.b16 %v1800
        %v1849 = vunpack.c.l.b16 %v1801
        %v1850 = vunpack.c.l.b16 %v1802
        %v1851 = vunpack.c.l.b16 %v1803
        %v1852 = vunpack.c.l.b16 %v1804
        %v1853 = vunpack.c.l.b16 %v1805
        %v1854 = vunpack.c.l.b16 %v1806
        %v1855 = vunpack.c.l.b16 %v1807
        %v1856 = vunpack.c.l.b16 %v1808
        %v1857 = vunpack.c.l.b16 %v1809
        %v1858 = vpack.c.b16 %v1843, %v1842
        %v1859 = vpack.c.b16 %v1845, %v1844
        %v1860 = vpack.c.b16 %v1847, %v1846
        %v1861 = vpack.c.b16 %v1849, %v1848
        %v1862 = vpack.c.b16 %v1851, %v1850
        %v1863 = vpack.c.b16 %v1853, %v1852
        %v1864 = vpack.c.b16 %v1855, %v1854
        %v1865 = vpack.c.b16 %v1857, %v1856
        %1874 = vmatpush.bf16.msra.mxu0 %v1865
        %1875 = vmatpush.bf16.msra.mxu0 %v1864
        %1876 = vmatpush.bf16.msra.mxu0 %v1863
        %1877 = vmatpush.bf16.msra.mxu0 %v1862
        %1878 = vmatpush.bf16.msra.mxu0 %v1861
        %1879 = vmatpush.bf16.msra.mxu0 %v1860
        %1880 = vmatpush.bf16.msra.mxu0 %v1859
        %1881 = vmatpush.bf16.msra.mxu0 %v1858
        %1882 = vmatmul.bf16.gmra.mxu0 %v1818
        %v1883 = vpop.f32.mrf.mxu0
        %v1884 = vadd.f32 0.0, %v1883
        %v1885 = vpop.f32.mrf.mxu0
        %v1886 = vadd.f32 0.0, %v1885
        %1887 = vmatmul.bf16.gmra.mxu0 %v1819
        %v1888 = vpop.f32.mrf.mxu0
        %v1889 = vadd.f32 0.0, %v1888
        %v1890 = vpop.f32.mrf.mxu0
        %v1891 = vadd.f32 0.0, %v1890
        %1892 = vmatmul.bf16.gmra.mxu0 %v1820
        %v1893 = vpop.f32.mrf.mxu0
        %v1894 = vadd.f32 0.0, %v1893
        %v1895 = vpop.f32.mrf.mxu0
        %v1896 = vadd.f32 0.0, %v1895
        %1897 = vmatmul.bf16.gmra.mxu0 %v1821
        %v1898 = vpop.f32.mrf.mxu0
        %v1899 = vadd.f32 0.0, %v1898
        %v1900 = vpop.f32.mrf.mxu0
        %v1901 = vadd.f32 0.0, %v1900
        %1902 = vdwg.mxu0
        %v1903 = vadd.f32 %v1673, %v1884
        %v1904 = vadd.f32 %v1674, %v1886
        %v1905 = vadd.f32 %v1675, %v1889
        %v1906 = vadd.f32 %v1676, %v1891
        %v1907 = vadd.f32 %v1677, %v1894
        %v1908 = vadd.f32 %v1678, %v1896
        %v1909 = vadd.f32 %v1679, %v1899
        %v1910 = vadd.f32 %v1680, %v1901
        %1911 = vst [vmem:[#allocation2] sm:$0xff] %v1903
        %1912 = vst [vmem:[#allocation2 + $0x8] sm:$0xff] %v1904
        %1913 = vst [vmem:[#allocation2 + $0x10] sm:$0xff] %v1905
        %1914 = vst [vmem:[#allocation2 + $0x18] sm:$0xff] %v1906
        %1915 = vst [vmem:[#allocation2 + $0x20] sm:$0xff] %v1907
        %1916 = vst [vmem:[#allocation2 + $0x28] sm:$0xff] %v1908
        %1917 = vst [vmem:[#allocation2 + $0x30] sm:$0xff] %v1909
        %1918 = vst [vmem:[#allocation2 + $0x38] sm:$0xff] %v1910
        %v1919 = vld [vmem:[#allocation2] sm:$0xff]
        %v1920 = vld [vmem:[#allocation2 + $0x8] sm:$0xff]
        %v1921 = vld [vmem:[#allocation2 + $0x10] sm:$0xff]
        %v1922 = vld [vmem:[#allocation2 + $0x18] sm:$0xff]
        %v1923 = vld [vmem:[#allocation2 + $0x20] sm:$0xff]
        %v1924 = vld [vmem:[#allocation2 + $0x28] sm:$0xff]
        %v1925 = vld [vmem:[#allocation2 + $0x30] sm:$0xff]
        %v1926 = vld [vmem:[#allocation2 + $0x38] sm:$0xff]
        %v1927 = vpack.c.bf16 %v1919, %v1919
        %v1928 = vpack.c.bf16 %v1920, %v1920
        %v1929 = vpack.c.bf16 %v1921, %v1921
        %v1930 = vpack.c.bf16 %v1922, %v1922
        %v1931 = vpack.c.bf16 %v1923, %v1923
        %v1932 = vpack.c.bf16 %v1924, %v1924
        %v1933 = vpack.c.bf16 %v1925, %v1925
        %v1934 = vpack.c.bf16 %v1926, %v1926
        %1935 = vst [vmem:[%s201] sm:$0xf] %v1927
        %1936 = vst [vmem:[%s201 + $0x4] sm:$0xf] %v1928
        %1937 = vst [vmem:[%s201 + $0x8] sm:$0xf] %v1929
        %1938 = vst [vmem:[%s201 + $0xc] sm:$0xf] %v1930
        %1939 = vst [vmem:[%s201 + $0x10] sm:$0xf] %v1931
        %1940 = vst [vmem:[%s201 + $0x14] sm:$0xf] %v1932
        %1941 = vst [vmem:[%s201 + $0x18] sm:$0xf] %v1933
        %1942 = vst [vmem:[%s201 + $0x1c] sm:$0xf] %v1934
        %s1943 = sand.u32 %s117, 1
        %s1944 = scalar_lea.sflag [#allocation4], %s1943
        %s1945 = sand.u32 %s117, 1
        %s1946 = smul.addr %s1945, 32
        %s1947 = scalar_lea.vmem [#allocation3], %s1946
        // Predicated region
        $region33: #{tpu_custom_call.1} parent=31 // pred_check
          %p1948 = pneg %p127
        $region34: #{tpu_custom_call.1} parent=31 // pred_check_branch
          %1950 = sbr.rel (%p1948) target = $region36
        $region35: #{tpu_custom_call.1} parent=31 // pred_region
          %1952 = vsyncadd %s1944, 0
          %s1953 = smul.addr %s21, 8
          %s1954 = sadd.s32 %s22, %s1953
          %s1955 = smul.addr %s1954, 4
          %s1956 = scalar_lea.hbm %s3, %s1955
          %s1957 = sshll.u32 %s1947, 4
          %s1958 = int_to_ptr.vmem [resolvable:$true] %s1957
          %s1959 = sshll.u32 %s1956, 4
          %s1960 = int_to_ptr.hbm [resolvable:$true] %s1959
          %1965 = dma.vmem_to_hbm [thread:$0]  %s1958, 512, %s1960, %s1944, 64, 64, 4
        $region36: #{tpu_custom_call.1} parent=31 // pred_fallthru
          _
      $region32: #{tpu_custom_call.1} parent=5 // pred_fallthru
        _
      %p1966 = scmp.le.s32.totalorder 2, %s12
      // Predicated region
      $region37: #{tpu_custom_call.1} parent=5 // pred_check
        %p1967 = pneg %p1966
      $region38: #{tpu_custom_call.1} parent=5 // pred_check_branch
        %1969 = sbr.rel (%p1967) target = $region40
      $region39: #{tpu_custom_call.1} parent=5 // pred_region
        %s1970 = ssub.s32 %s12, 2
        // Predicated region
        $region41: #{tpu_custom_call.1} parent=39 // pred_check
          %p1971 = pneg %p133
        $region42: #{tpu_custom_call.1} parent=39 // pred_check_branch
          %1973 = sbr.rel (%p1971) target = $region44
        $region43: #{tpu_custom_call.1} parent=39 // pred_region
          %s1974 = sand.u32 %s118, 1
          %s1975 = scalar_lea.sflag [#allocation4], %s1974
          %s1976 = sand.u32 %s118, 1
          %s1977 = smul.addr %s1976, 32
          %s1978 = scalar_lea.vmem [#allocation3], %s1977
          %1980 = dma.done %s1975, 512
        $region44: #{tpu_custom_call.1} parent=39 // pred_fallthru
          _
      $region40: #{tpu_custom_call.1} parent=5 // pred_fallthru
        _
    $region6: #{tpu_custom_call.1} parent=1 // loop_footer
      %s16 = sadd.s32 1, %s12
    $region7: #{tpu_custom_call.1} parent=1 // loop_footer_branch
      %11 = sbr.rel target = $region3
    $region8: #{tpu_custom_call.1} parent=1 // loop_exit
      _
    %1981 = vsyncpa [#allocation4], 1
    %s1982 = scalar_lea.sflag [#allocation4], 1
    %1983 = vsyncpa %s1982, 1

</llo_original>
